<compile_context>
chip_gen: v6e
topology: v6e:2x2x1
jax: 0.10.0
libtpu: 0.0.40
codegen_flags: <defaults>
</compile_context>

<pallas_src>
import functools

import jax
import jax.numpy as jnp
from jax.experimental import pallas as pl
from jax.experimental.pallas import tpu as pltpu


# ----------------------------------------------------------------------------
# Pallas kernel: fused 3x3 conv (+bias) [+ReLU] [+2x2 max-pool]
# ----------------------------------------------------------------------------
def _conv3x3_kernel(x_ref, w_ref, b_ref, o_ref, xp_ref, acc_ref, *,
                    H, W, Cin, Cout, relu, pool, im2col):
    """One image per grid step.

    x_ref : (1, H, W, Cin)      bf16 unpadded NHWC tile
    w_ref : (3, 3*Cin, Cout)    bf16, [dy, dx*Cin + c, o]        (generic path)
            (9*Cin, Cout)       bf16, [(dy*3+dx)*Cin + c, o]     (im2col path)
    b_ref : (1, Cout)           f32
    o_ref : (1, Hout, Wout, Cout)
    xp_ref: VMEM (H+2, W+2, Cin) bf16 scratch  (zero-padded tile, built in-kernel)
    acc_ref: VMEM (H*W, Cout)   f32 scratch    (accumulator)
    """
    C3 = 3 * Cin
    x = x_ref[0]                                        # (H, W, Cin) bf16

    # Zero-padded tile in VMEM -- replaces the HBM-side jnp.pad of the old version.
    xp_ref[...] = jnp.zeros_like(xp_ref)
    xp_ref[1:H + 1, 1:W + 1, :] = x

    # Stack the three dx taps on the channel (lane) axis: contraction depth 3*Cin.
    # Only 3 shifted slices are materialized (vs. 9 before); the dy taps below are
    # cheap leading-dim slices of this stacked value.
    xs = jnp.concatenate(
        [xp_ref[:, 0:W, :], xp_ref[:, 1:W + 1, :], xp_ref[:, 2:W + 2, :]],
        axis=2)                                         # (H+2, W, 3*Cin)

    # Bias-initialized f32 accumulator (explicit VMEM scratch).
    acc_ref[...] = jnp.broadcast_to(b_ref[...], (H * W, Cout))

    if im2col:
        # Small-Cin path (first layer, Cin=3): fold all 9 taps -> one K=27 matmul.
        patch = jnp.concatenate([xs[dy:dy + H] for dy in range(3)], axis=2)
        acc_ref[...] += jnp.dot(patch.reshape(H * W, 3 * C3), w_ref[...],
                                preferred_element_type=jnp.float32)
    else:
        # Three K = 3*Cin matmuls; xs[dy:dy+H] is a contiguous leading-dim slice.
        for dy in range(3):
            acc_ref[...] += jnp.dot(xs[dy:dy + H].reshape(H * W, C3), w_ref[dy],
                                    preferred_element_type=jnp.float32)

    y = acc_ref[...]
    if relu:
        y = jnp.maximum(y, 0.0)
    y = y.reshape(H, W, Cout)
    if pool:
        # Fused 2x2/2 max-pool (nn.MaxPool2d(2, 2)): rows first via a free
        # leading-dim split, then columns (single relayout on half the rows).
        y = jnp.max(y.reshape(H // 2, 2, W, Cout), axis=1)         # (H/2, W, C)
        y = jnp.max(y.reshape(H // 2, W // 2, 2, Cout), axis=2)    # (H/2, W/2, C)
    o_ref[0] = y.astype(o_ref.dtype)


# ----------------------------------------------------------------------------
# pallas_call wrapper for one fused conv block
# ----------------------------------------------------------------------------
def conv3x3_block(x_nhwc, prep, *, relu, pool, out_dtype):
    """x_nhwc: (N, H, W, Cin); prep: prepared conv params (see prepare_params)."""
    N, H, W, Cin = x_nhwc.shape
    Cout = prep["cout"]
    im2col = prep["im2col"]
    if pool:
        # TODO(synk): PyTorch MaxPool2d floors odd spatial sizes; not handled here.
        assert H % 2 == 0 and W % 2 == 0, "fused 2x2 max-pool requires even H, W"
    Hout, Wout = (H // 2, W // 2) if pool else (H, W)

    if im2col:
        w_spec = pl.BlockSpec((9 * Cin, Cout), lambda n: (0, 0))
    else:
        w_spec = pl.BlockSpec((3, 3 * Cin, Cout), lambda n: (0, 0, 0))

    kern = functools.partial(_conv3x3_kernel, H=H, W=W, Cin=Cin, Cout=Cout,
                             relu=relu, pool=pool, im2col=im2col)

    return pl.pallas_call(
        kern,
        out_shape=jax.ShapeDtypeStruct((N, Hout, Wout, Cout), out_dtype),
        grid_spec=pltpu.PrefetchScalarGridSpec(
            num_scalar_prefetch=0,
            grid=(N,),                                   # one image per grid step
            in_specs=[
                pl.BlockSpec((1, H, W, Cin), lambda n: (n, 0, 0, 0)),
                w_spec,
                pl.BlockSpec((1, Cout), lambda n: (0, 0)),
            ],
            out_specs=pl.BlockSpec((1, Hout, Wout, Cout), lambda n: (n, 0, 0, 0)),
            scratch_shapes=[
                pltpu.VMEM((H + 2, W + 2, Cin), jnp.bfloat16),  # padded input tile
                pltpu.VMEM((H * W, Cout), jnp.float32),          # f32 accumulator
            ],
        ),
        compiler_params=pltpu.CompilerParams(
            dimension_semantics=("parallel",),
            vmem_limit_bytes=48 * 1024 * 1024,
        ),
    )(x_nhwc.astype(jnp.bfloat16), prep["w"], prep["b"])


# ----------------------------------------------------------------------------
# TruncatedVGG19 structure (mirrors the PyTorch __init__ layer-counting logic)
# ----------------------------------------------------------------------------
VGG19_CFG = [64, 64, "M", 128, 128, "M", 256, 256, 256, 256, "M",
             512, 512, 512, 512, "M", 512, 512, 512, 512, "M"]


def build_truncated_layers(i, j):
    """Truncate vgg19.features at the j-th conv after the (i-1)-th maxpool,
    keeping the ReLU that follows it (same logic as TruncatedVGG19.__init__)."""
    layers = []
    in_ch = 3
    for v in VGG19_CFG:
        if v == "M":
            layers.append(("maxpool", None, None))
        else:
            layers.append(("conv", in_ch, v))
            layers.append(("relu", None, None))
            in_ch = v

    maxpool_counter = 0
    conv_counter = 0
    truncate_at = 0
    found = False
    for layer in layers:
        truncate_at += 1
        if layer[0] == "conv":
            conv_counter += 1
        if layer[0] == "maxpool":
            maxpool_counter += 1
            conv_counter = 0
        if maxpool_counter == i - 1 and conv_counter == j:
            found = True
            break
    assert found and maxpool_counter == i - 1 and conv_counter == j, \
        "i=%d, j=%d does not match the VGG19 structure" % (i, j)
    return layers[: truncate_at + 1]


def init_params(layers, key):
    """Deterministic synthetic weights in PyTorch (Cout, Cin, 3, 3) layout."""
    params = []
    for kind, cin, cout in layers:
        if kind == "conv":
            key, kw, kb = jax.random.split(key, 3)
            scale = 1.0 / jnp.sqrt(jnp.float32(cin * 9))
            w = jax.random.normal(kw, (cout, cin, 3, 3), jnp.float32) * scale
            b = jax.random.normal(kb, (cout,), jnp.float32) * 0.01
            params.append((w, b))
        else:
            params.append(None)
    return params


def prepare_params(layers, params):
    """One-time re-layout of conv weights for the kernel (hoisted out of forward)."""
    prepared = []
    for (kind, cin, cout), p in zip(layers, params):
        if kind != "conv":
            prepared.append(None)
            continue
        w, b = p
        w9 = jnp.transpose(w, (2, 3, 1, 0))          # (3, 3, Cin, Cout) = [dy, dx, c, o]
        im2col = (9 * cin) <= 128                    # tiny Cin: single K=9*Cin matmul
        if im2col:
            w_arr = w9.reshape(9 * cin, cout)        # [(dy*3+dx)*Cin + c, o]
        else:
            w_arr = w9.reshape(3, 3 * cin, cout)     # [dy, dx*Cin + c, o]
        prepared.append({
            "w": w_arr.astype(jnp.bfloat16),
            "b": b.reshape(1, cout).astype(jnp.float32),
            "im2col": im2col,
            "cin": cin,
            "cout": cout,
        })
    return prepared


def truncated_vgg19_forward(x_nchw, layers, prepared):
    """Forward pass. Input (N, 3, H, W) NCHW -> feature map NCHW (f32)."""
    x = jnp.transpose(x_nchw, (0, 2, 3, 1))          # NCHW -> NHWC
    n = len(layers)
    idx = 0
    while idx < n:
        kind = layers[idx][0]
        if kind == "conv":
            fuse_relu = (idx + 1 < n) and layers[idx + 1][0] == "relu"
            nxt = idx + 1 + int(fuse_relu)
            fuse_pool = (nxt < n) and layers[nxt][0] == "maxpool"
            step = 1 + int(fuse_relu) + int(fuse_pool)
            is_last = (idx + step) >= n
            x = conv3x3_block(x, prepared[idx], relu=fuse_relu, pool=fuse_pool,
                              out_dtype=jnp.float32 if is_last else jnp.bfloat16)
            idx += step
        elif kind == "relu":
            x = jnp.maximum(x, 0.0)                  # standalone ReLU (not hit in VGG19)
            idx += 1
        else:
            # Every maxpool in VGG19 follows conv+relu and is fused into that conv.
            raise NotImplementedError("standalone maxpool is never reached for VGG19")
    return jnp.transpose(x, (0, 3, 1, 2)).astype(jnp.float32)   # NHWC -> NCHW


# ----------------------------------------------------------------------------
# Pure-JAX references (module semantics); match_bf16=True mirrors the kernel's
# bf16 storage/compute with f32 accumulation for a tight correctness check.
# ----------------------------------------------------------------------------
def reference_forward(x_nchw, layers, params, match_bf16=False):
    x = x_nchw.astype(jnp.float32)
    for idx, (kind, _, _) in enumerate(layers):
        if kind == "conv":
            w, b = params[idx]
            if match_bf16:
                x = x.astype(jnp.bfloat16).astype(jnp.float32)
                w = w.astype(jnp.bfloat16).astype(jnp.float32)
            x = jax.lax.conv_general_dilated(
                x, w, window_strides=(1, 1), padding=((1, 1), (1, 1)),
                dimension_numbers=("NCHW", "OIHW", "NCHW"))
            x = x + b.reshape(1, -1, 1, 1)
        elif kind == "relu":
            x = jnp.maximum(x, 0.0)
        else:
            x = jax.lax.reduce_window(
                x, -jnp.inf, jax.lax.max,
                window_dimensions=(1, 1, 2, 2), window_strides=(1, 1, 2, 2),
                padding="VALID")
    return x


# ----------------------------------------------------------------------------
if __name__ == "__main__":
    # TruncatedVGG19(i=2, j=2): conv-relu-conv-relu-maxpool-conv-relu-conv-relu
    i_pool, j_conv = 2, 2
    layers = build_truncated_layers(i_pool, j_conv)

    key = jax.random.PRNGKey(0)
    k_x, k_p = jax.random.split(key)
    params = init_params(layers, k_p)
    prepared = prepare_params(layers, params)

    N, C, H, W = 2, 3, 16, 16
    x = jax.random.normal(k_x, (N, C, H, W), jnp.float32)

    out = jax.block_until_ready(truncated_vgg19_forward(x, layers, prepared))
    assert out.shape == (N, 128, H // 2, W // 2), out.shape

    # Tight check against a bf16-matched reference (validates the kernel math).
    ref_bf16 = jax.block_until_ready(reference_forward(x, layers, params, match_bf16=True))
    assert jnp.allclose(out, ref_bf16, rtol=1e-2, atol=1e-2), \
        float(jnp.max(jnp.abs(out - ref_bf16)))

    # Looser sanity check against the full-f32 module semantics (bf16 rounding only).
    ref_f32 = jax.block_until_ready(reference_forward(x, layers, params, match_bf16=False))
    assert jnp.allclose(out, ref_f32, rtol=1e-1, atol=1e-1), \
        float(jnp.max(jnp.abs(out - ref_f32)))

    print("KERNEL_OK")
</pallas_src>

<mosaic_0001>
module attributes {stable_mosaic.version = 11 : i64} {
  func.func @_conv3x3_kernel(%arg0: i32, %arg1: memref<1x16x16x3xbf16, #tpu.memory_space<vmem>>, %arg2: memref<27x64xbf16, #tpu.memory_space<vmem>>, %arg3: memref<1x64xf32, #tpu.memory_space<vmem>>, %arg4: memref<1x16x16x64xbf16, #tpu.memory_space<vmem>>, %arg5: memref<18x18x3xbf16, #tpu.memory_space<vmem>>, %arg6: memref<256x64xf32, #tpu.memory_space<vmem>>) attributes {dimension_semantics = [#tpu.dimension_semantics<parallel>], iteration_bounds = array<i64: 2>, scalar_prefetch = 0 : i64, scratch_operands = 2 : i64, tpu.core_type = #tpu.core_type<tc>, window_params = [{transform_indices = @transform_0, window_bounds = array<i64: 1, 16, 16, 3>}, {pipeline_mode = #tpu.pipeline_mode<synchronous>, transform_indices = @transform_1, window_bounds = array<i64: 27, 64>}, {pipeline_mode = #tpu.pipeline_mode<synchronous>, transform_indices = @transform_2, window_bounds = array<i64: 1, 64>}, {transform_indices = @transform_3, window_bounds = array<i64: 1, 16, 16, 64>}]} {
    %c0 = arith.constant 0 : index
    %c0_0 = arith.constant 0 : index
    %c0_1 = arith.constant 0 : index
    %c0_2 = arith.constant 0 : index
    %0 = vector.load %arg1[%c0, %c0_0, %c0_1, %c0_2] : memref<1x16x16x3xbf16, #tpu.memory_space<vmem>>, vector<1x16x16x3xbf16>
    %1 = vector.shape_cast %0 : vector<1x16x16x3xbf16> to vector<16x16x3xbf16>
    %cst = arith.constant 0.000000e+00 : bf16
    %2 = vector.broadcast %cst : bf16 to vector<18x18x3xbf16>
    %c0_3 = arith.constant 0 : index
    %c0_4 = arith.constant 0 : index
    %c0_5 = arith.constant 0 : index
    %3 = vector.load %arg5[%c0_3, %c0_4, %c0_5] : memref<18x18x3xbf16, #tpu.memory_space<vmem>>, vector<18x18x3xbf16>
    tpu.vector_store %arg5[%c0_3, %c0_4, %c0_5], %2 {strides = array<i32>} : memref<18x18x3xbf16, #tpu.memory_space<vmem>>, vector<18x18x3xbf16>,
    %c1 = arith.constant 1 : index
    %c1_6 = arith.constant 1 : index
    %c0_7 = arith.constant 0 : index
    %4 = vector.load %arg5[%c1, %c1_6, %c0_7] : memref<18x18x3xbf16, #tpu.memory_space<vmem>>, vector<16x16x3xbf16>
    tpu.vector_store %arg5[%c1, %c1_6, %c0_7], %1 {strides = array<i32>} : memref<18x18x3xbf16, #tpu.memory_space<vmem>>, vector<16x16x3xbf16>,
    %c0_8 = arith.constant 0 : index
    %c0_9 = arith.constant 0 : index
    %c0_10 = arith.constant 0 : index
    %5 = vector.load %arg5[%c0_8, %c0_9, %c0_10] : memref<18x18x3xbf16, #tpu.memory_space<vmem>>, vector<18x16x3xbf16>
    %c0_11 = arith.constant 0 : index
    %c1_12 = arith.constant 1 : index
    %c0_13 = arith.constant 0 : index
    %6 = vector.load %arg5[%c0_11, %c1_12, %c0_13] : memref<18x18x3xbf16, #tpu.memory_space<vmem>>, vector<18x16x3xbf16>
    %c0_14 = arith.constant 0 : index
    %c2 = arith.constant 2 : index
    %c0_15 = arith.constant 0 : index
    %7 = vector.load %arg5[%c0_14, %c2, %c0_15] : memref<18x18x3xbf16, #tpu.memory_space<vmem>>, vector<18x16x3xbf16>
    %8 = tpu.concatenate %5, %6, %7 in 2 : vector<18x16x3xbf16>, vector<18x16x3xbf16>, vector<18x16x3xbf16> -> vector<18x16x9xbf16>
    %c0_16 = arith.constant 0 : index
    %c0_17 = arith.constant 0 : index
    %9 = vector.load %arg3[%c0_16, %c0_17] : memref<1x64xf32, #tpu.memory_space<vmem>>, vector<1x64xf32>
    %10 = vector.shape_cast %9 : vector<1x64xf32> to vector<1x64xf32>
    %11 = vector.broadcast %10 : vector<1x64xf32> to vector<256x64xf32>
    %c0_18 = arith.constant 0 : index
    %c0_19 = arith.constant 0 : index
    %12 = vector.load %arg6[%c0_18, %c0_19] : memref<256x64xf32, #tpu.memory_space<vmem>>, vector<256x64xf32>
    tpu.vector_store %arg6[%c0_18, %c0_19], %11 {strides = array<i32>} : memref<256x64xf32, #tpu.memory_space<vmem>>, vector<256x64xf32>,
    %13 = vector.extract_strided_slice %8 {offsets = [0, 0, 0], sizes = [16, 16, 9], strides = [1, 1, 1]} : vector<18x16x9xbf16> to vector<16x16x9xbf16>
    %14 = vector.extract_strided_slice %8 {offsets = [1, 0, 0], sizes = [16, 16, 9], strides = [1, 1, 1]} : vector<18x16x9xbf16> to vector<16x16x9xbf16>
    %15 = vector.extract_strided_slice %8 {offsets = [2, 0, 0], sizes = [16, 16, 9], strides = [1, 1, 1]} : vector<18x16x9xbf16> to vector<16x16x9xbf16>
    %16 = tpu.concatenate %13, %14, %15 in 2 : vector<16x16x9xbf16>, vector<16x16x9xbf16>, vector<16x16x9xbf16> -> vector<16x16x27xbf16>
    %c0_20 = arith.constant 0 : index
    %c0_21 = arith.constant 0 : index
    %17 = vector.load %arg6[%c0_20, %c0_21] : memref<256x64xf32, #tpu.memory_space<vmem>>, vector<256x64xf32>
    %18 = vector.shape_cast %16 : vector<16x16x27xbf16> to vector<256x27xbf16>
    %c0_22 = arith.constant 0 : index
    %c0_23 = arith.constant 0 : index
    %19 = vector.load %arg2[%c0_22, %c0_23] : memref<27x64xbf16, #tpu.memory_space<vmem>>, vector<27x64xbf16>
    %cst_24 = arith.constant dense<0.000000e+00> : vector<256x64xf32>
    %20 = tpu.matmul %18, %19, %cst_24 {dimension_numbers = #tpu.dot_dimension_numbers<[1], [0], [0], [1], [0, 0, 1, 1], [], []>} : vector<256x27xbf16>, vector<27x64xbf16>, vector<256x64xf32> -> vector<256x64xf32>
    %21 = arith.addf %17, %20 : vector<256x64xf32>
    %c0_25 = arith.constant 0 : index
    %c0_26 = arith.constant 0 : index
    %22 = vector.load %arg6[%c0_25, %c0_26] : memref<256x64xf32, #tpu.memory_space<vmem>>, vector<256x64xf32>
    tpu.vector_store %arg6[%c0_25, %c0_26], %21 {strides = array<i32>} : memref<256x64xf32, #tpu.memory_space<vmem>>, vector<256x64xf32>,
    %c0_27 = arith.constant 0 : index
    %c0_28 = arith.constant 0 : index
    %23 = vector.load %arg6[%c0_27, %c0_28] : memref<256x64xf32, #tpu.memory_space<vmem>>, vector<256x64xf32>
    %cst_29 = arith.constant 0.000000e+00 : f32
    %24 = vector.broadcast %cst_29 : f32 to vector<256x64xf32>
    %25 = arith.maximumf %23, %24 : vector<256x64xf32>
    %26 = vector.shape_cast %25 : vector<256x64xf32> to vector<16x16x64xf32>
    %27 = arith.truncf %26 : vector<16x16x64xf32> to vector<16x16x64xbf16>
    %c0_30 = arith.constant 0 : index
    %c0_31 = arith.constant 0 : index
    %c0_32 = arith.constant 0 : index
    %c0_33 = arith.constant 0 : index
    %28 = vector.load %arg4[%c0_30, %c0_31, %c0_32, %c0_33] : memref<1x16x16x64xbf16, #tpu.memory_space<vmem>>, vector<1x16x16x64xbf16>
    %29 = vector.shape_cast %28 : vector<1x16x16x64xbf16> to vector<16x16x64xbf16>
    %30 = vector.shape_cast %27 : vector<16x16x64xbf16> to vector<1x16x16x64xbf16>
    tpu.vector_store %arg4[%c0_30, %c0_31, %c0_32, %c0_33], %30 {strides = array<i32>} : memref<1x16x16x64xbf16, #tpu.memory_space<vmem>>, vector<1x16x16x64xbf16>,
    return
  }
  func.func @transform_0(%arg0: i32) -> (i32, i32, i32, i32) {
    %c0_i32 = arith.constant 0 : i32
    %c0_i32_0 = arith.constant 0 : i32
    %c0_i32_1 = arith.constant 0 : i32
    %c0_i32_2 = arith.constant 0 : i32
    return %arg0, %c0_i32, %c0_i32_0, %c0_i32_1 : i32, i32, i32, i32
  }
  func.func @transform_1(%arg0: i32) -> (i32, i32) {
    %c0_i32 = arith.constant 0 : i32
    %c0_i32_0 = arith.constant 0 : i32
    %c0_i32_1 = arith.constant 0 : i32
    return %c0_i32, %c0_i32_0 : i32, i32
  }
  func.func @transform_2(%arg0: i32) -> (i32, i32) {
    %c0_i32 = arith.constant 0 : i32
    %c0_i32_0 = arith.constant 0 : i32
    %c0_i32_1 = arith.constant 0 : i32
    return %c0_i32, %c0_i32_0 : i32, i32
  }
  func.func @transform_3(%arg0: i32) -> (i32, i32, i32, i32) {
    %c0_i32 = arith.constant 0 : i32
    %c0_i32_0 = arith.constant 0 : i32
    %c0_i32_1 = arith.constant 0 : i32
    %c0_i32_2 = arith.constant 0 : i32
    return %arg0, %c0_i32, %c0_i32_0, %c0_i32_1 : i32, i32, i32, i32
  }
}

</mosaic_0001>

<llo_original>
// kernel: tpu_custom_call.1
$region0: #{tpu_custom_call.1}
  #allocation0 [shape = 'u32[]', space=smem, size = 0x4, offset = 0x4, fixed_abs, tag = 'smem constant byte address 0x4 - core index']
  #allocation1 [shape = 'u32[144,128]{1,0:T(1,128)}', space=vmem, size = 0x12000, scoped, tag = 'internal scratch']
  #allocation2 [shape = 'bf16[18,18,3]{2,1,0:T(8,128)(2,1)}', space=vmem, size = 0x1b000, scoped, tag = 'scratch operand']
  #allocation3 [shape = 'f32[256,64]{1,0:T(8,128)}', space=vmem, size = 0x20000, scoped, tag = 'scratch operand']
  %s0 = inlined_call_operand.vmem [shape: bf16[2,16,16,3], index: 0, kind: input, shape index: {}]
  %s1 = inlined_call_operand.vmem [shape: bf16[27,64], index: 1, kind: input, shape index: {}]
  %s2 = inlined_call_operand.vmem [shape: f32[1,64], index: 2, kind: input, shape index: {}]
  %s3 = inlined_call_operand.hbm [shape: bf16[2,16,16,64], index: 3, kind: output, shape index: {}]
  %s4 = sld [smem:[#allocation0]]
  $region45: #{tpu_custom_call.1} parent=0
    _
  %s6 = ssub.s32 1, %s4
  %s7 = scalar_select 0, %s6, %s4
  $region1: #{tpu_custom_call.1} parent=0
    #allocation4 [shape = 'u8[131072]{0}', space=vmem, size = 0x20000, scoped, tag = 'output window, operand 0']
    #allocation5 [shape = 's32[2]{0}', space=sflag, size = 0x8, scoped, tag = 'scoped memory for tpu_custom_call.1']
    %8 = vsyncpa [#allocation5], 0
    %s9 = scalar_lea.sflag [#allocation5], 1
    %10 = vsyncpa %s9, 0
    loop: start=0, step=1, limit=4
    $region2: #{tpu_custom_call.1} parent=1 // loop_pre_header
      _
    $region3: #{tpu_custom_call.1} parent=1 // loop_header
      %s12 = sphi 0, %s16
      %p13 = scmp.ge.s32.totalorder %s12, 4
      %s22 = sphi 0, %s24
      %s25 = sphi 0, %s22
      %s26 = sphi 0, %s25
      %s42 = sphi 0, %s26
      %s46 = sphi 0, %s46
      %s48 = sphi 0, %s46
      %s49 = sphi 0, %s48
      %s63 = sphi 0, %s49
      %s67 = sphi 0, %s67
      %s69 = sphi 0, %s67
      %s70 = sphi 0, %s69
      %s84 = sphi 0, %s70
      %s90 = sphi 0, %s92
      %s93 = sphi 0, %s90
      %s94 = sphi 0, %s93
      %s110 = sphi 0, %s94
    $region4: #{tpu_custom_call.1} parent=1 // loop_header_branch
      %15 = sbr.rel (%p13) target = $region8
    $region5: #{tpu_custom_call.1} parent=1 // loop_body
      %s17 = ssub.s32 %s12, 1
      %s18 = ssub.s32 %s12, 2
      %s19 = sadd.s32 %s12, 1
      %s20 = ssub.s32 %s12, %s19
      %p21 = scmp.eq.s32.totalorder %s20, 0
      %s23 = sadd.s32 %s22, 1
      %s24 = scalar_select %p21, %s22, %s23
      %p27 = pneg %p21
      %p28 = scmp.eq.s32.totalorder %s12, 1
      %p29 = por %p27, %p28
      %p30 = scmp.ne.s32.totalorder %s22, %s25
      %p31 = scmp.eq.s32.totalorder %s12, 0
      %p32 = por %p30, %p31
      %p33 = scmp.ne.s32.totalorder %s22, %s25
      %p34 = scmp.eq.s32.totalorder %s17, 1
      %p35 = por %p33, %p34
      %p36 = scmp.ne.s32.totalorder %s25, %s26
      %p37 = scmp.eq.s32.totalorder %s17, 0
      %p38 = por %p36, %p37
      %p39 = scmp.ne.s32.totalorder %s25, %s26
      %p40 = scmp.eq.s32.totalorder %s18, 1
      %p41 = por %p39, %p40
      %p43 = scmp.ne.s32.totalorder %s26, %s42
      %p44 = scmp.eq.s32.totalorder %s18, 0
      %p45 = por %p43, %p44
      %s47 = sadd.s32 %s46, 1
      %p50 = scmp.eq.s32.totalorder %s12, 1
      %p51 = scmp.ne.s32.totalorder %s46, %s48
      %p52 = scmp.eq.s32.totalorder %s12, 0
      %p53 = por %p51, %p52
      %p54 = scmp.ne.s32.totalorder %s46, %s48
      %p55 = scmp.eq.s32.totalorder %s17, 1
      %p56 = por %p54, %p55
      %p57 = scmp.ne.s32.totalorder %s48, %s49
      %p58 = scmp.eq.s32.totalorder %s17, 0
      %p59 = por %p57, %p58
      %p60 = scmp.ne.s32.totalorder %s48, %s49
      %p61 = scmp.eq.s32.totalorder %s18, 1
      %p62 = por %p60, %p61
      %p64 = scmp.ne.s32.totalorder %s49, %s63
      %p65 = scmp.eq.s32.totalorder %s18, 0
      %p66 = por %p64, %p65
      %s68 = sadd.s32 %s67, 1
      %p71 = scmp.eq.s32.totalorder %s12, 1
      %p72 = scmp.ne.s32.totalorder %s67, %s69
      %p73 = scmp.eq.s32.totalorder %s12, 0
      %p74 = por %p72, %p73
      %p75 = scmp.ne.s32.totalorder %s67, %s69
      %p76 = scmp.eq.s32.totalorder %s17, 1
      %p77 = por %p75, %p76
      %p78 = scmp.ne.s32.totalorder %s69, %s70
      %p79 = scmp.eq.s32.totalorder %s17, 0
      %p80 = por %p78, %p79
      %p81 = scmp.ne.s32.totalorder %s69, %s70
      %p82 = scmp.eq.s32.totalorder %s18, 1
      %p83 = por %p81, %p82
      %p85 = scmp.ne.s32.totalorder %s70, %s84
      %p86 = scmp.eq.s32.totalorder %s18, 0
      %p87 = por %p85, %p86
      %s88 = ssub.s32 %s12, %s19
      %p89 = scmp.eq.s32.totalorder %s88, 0
      %s91 = sadd.s32 %s90, 1
      %s92 = scalar_select %p89, %s90, %s91
      %p95 = pneg %p89
      %p96 = scmp.eq.s32.totalorder %s12, 1
      %p97 = por %p95, %p96
      %p98 = scmp.ne.s32.totalorder %s90, %s93
      %p99 = scmp.eq.s32.totalorder %s12, 0
      %p100 = por %p98, %p99
      %p101 = scmp.ne.s32.totalorder %s90, %s93
      %p102 = scmp.eq.s32.totalorder %s17, 1
      %p103 = por %p101, %p102
      %p104 = scmp.ne.s32.totalorder %s93, %s94
      %p105 = scmp.eq.s32.totalorder %s17, 0
      %p106 = por %p104, %p105
      %p107 = scmp.ne.s32.totalorder %s93, %s94
      %p108 = scmp.eq.s32.totalorder %s18, 1
      %p109 = por %p107, %p108
      %p111 = scmp.ne.s32.totalorder %s94, %s110
      %p112 = scmp.eq.s32.totalorder %s18, 0
      %p113 = por %p111, %p112
      %p114 = scmp.le.s32.totalorder 1, %s12
      %p115 = scmp.lt.s32.totalorder %s12, 3
      %p116 = pnand %p114, %p115
      %p117 = pneg %p116
      // Predicated region
      $region9: #{tpu_custom_call.1} parent=5 // pred_check
        _
      $region10: #{tpu_custom_call.1} parent=5 // pred_check_branch
        %119 = sbr.rel (%p116) target = $region12
      $region11: #{tpu_custom_call.1} parent=5 // pred_region
        %s120 = ssub.s32 %s12, 1
        // Predicated region
        $region13: #{tpu_custom_call.1} parent=11 // pred_check
          %p121 = pneg %p59
        $region14: #{tpu_custom_call.1} parent=11 // pred_check_branch
          %123 = sbr.rel (%p121) target = $region16
        $region15: #{tpu_custom_call.1} parent=11 // pred_region
          _
        $region16: #{tpu_custom_call.1} parent=11 // pred_fallthru
          _
        // Predicated region
        $region17: #{tpu_custom_call.1} parent=11 // pred_check
          %p124 = pneg %p80
        $region18: #{tpu_custom_call.1} parent=11 // pred_check_branch
          %126 = sbr.rel (%p124) target = $region20
        $region19: #{tpu_custom_call.1} parent=11 // pred_region
          _
        $region20: #{tpu_custom_call.1} parent=11 // pred_fallthru
          _
      $region12: #{tpu_custom_call.1} parent=5 // pred_fallthru
        _
      %p127 = scmp.lt.s32.totalorder %s12, 2
      // Predicated region
      $region21: #{tpu_custom_call.1} parent=5 // pred_check
        %p128 = pneg %p127
      $region22: #{tpu_custom_call.1} parent=5 // pred_check_branch
        %130 = sbr.rel (%p128) target = $region24
      $region23: #{tpu_custom_call.1} parent=5 // pred_region
        // Predicated region
        $region25: #{tpu_custom_call.1} parent=23 // pred_check
          %p131 = pneg %p32
        $region26: #{tpu_custom_call.1} parent=23 // pred_check_branch
          %133 = sbr.rel (%p131) target = $region28
        $region27: #{tpu_custom_call.1} parent=23 // pred_region
          %p134 = scmp.lt.s32.totalorder %s12, 1
          %s135 = scalar_select %p134, %s12, 1
          %s136 = smul.addr %s135, 32
          %s137 = smul.addr %s136, 4
          %s138 = scalar_lea.vmem %s0, %s137
        $region28: #{tpu_custom_call.1} parent=23 // pred_fallthru
          _
      $region24: #{tpu_custom_call.1} parent=5 // pred_fallthru
        _
      %p139 = scmp.le.s32.totalorder 1, %s12
      %p140 = scmp.lt.s32.totalorder %s12, 3
      %p141 = pnand %p139, %p140
      %p142 = pneg %p141
      // Predicated region
      $region29: #{tpu_custom_call.1} parent=5 // pred_check
        _
      $region30: #{tpu_custom_call.1} parent=5 // pred_check_branch
        %144 = sbr.rel (%p141) target = $region32
      $region31: #{tpu_custom_call.1} parent=5 // pred_region
        %s145 = ssub.s32 %s12, 1
        %p146 = scmp.lt.s32.totalorder %s17, 1
        %s147 = scalar_select %p146, %s17, 1
        %s148 = smul.addr %s147, 32
        %s149 = smul.addr %s148, 4
        %s150 = scalar_lea.vmem %s0, %s149
        %p151 = pneg %p38
        %p152 = pneg %p35
        %p153 = pneg %p59
        %p154 = pneg %p56
        %p155 = pneg %p80
        %p156 = pneg %p77
        %p157 = pneg %p106
        %p158 = pneg %p103
        %s159 = sand.u32 %s93, 1
        %s160 = scalar_lea.sflag [#allocation5], %s159
        %s161 = sand.u32 %s93, 1
        %s162 = smul.addr %s161, 128
        %s163 = scalar_lea.vmem [#allocation4], %s162
        %p164 = scmp.lt.s32.totalorder %s17, 1
        %s165 = scalar_select %p164, %s17, 1
        %s166 = smul.addr %s165, 32
        %s167 = smul.addr %s166, 4
        %s168 = scalar_lea.vmem %s0, %s167
        %v170 = vld [vmem:[%s168] sm:$0xf]
        %v171 = vld [vmem:[%s168 + $0x4] sm:$0xf]
        %v172 = vld [vmem:[%s168 + $0x8] sm:$0xf]
        %v173 = vld [vmem:[%s168 + $0xc] sm:$0xf]
        %v174 = vld [vmem:[%s168 + $0x10] sm:$0xf]
        %v175 = vld [vmem:[%s168 + $0x14] sm:$0xf]
        %v176 = vld [vmem:[%s168 + $0x18] sm:$0xf]
        %v177 = vld [vmem:[%s168 + $0x1c] sm:$0xf]
        %v178 = vld [vmem:[%s168 + $0x20] sm:$0xf]
        %v179 = vld [vmem:[%s168 + $0x24] sm:$0xf]
        %v180 = vld [vmem:[%s168 + $0x28] sm:$0xf]
        %v181 = vld [vmem:[%s168 + $0x2c] sm:$0xf]
        %v182 = vld [vmem:[%s168 + $0x30] sm:$0xf]
        %v183 = vld [vmem:[%s168 + $0x34] sm:$0xf]
        %v184 = vld [vmem:[%s168 + $0x38] sm:$0xf]
        %v185 = vld [vmem:[%s168 + $0x3c] sm:$0xf]
        %v186 = vld [vmem:[%s168 + $0x40] sm:$0xf]
        %v187 = vld [vmem:[%s168 + $0x44] sm:$0xf]
        %v188 = vld [vmem:[%s168 + $0x48] sm:$0xf]
        %v189 = vld [vmem:[%s168 + $0x4c] sm:$0xf]
        %v190 = vld [vmem:[%s168 + $0x50] sm:$0xf]
        %v191 = vld [vmem:[%s168 + $0x54] sm:$0xf]
        %v192 = vld [vmem:[%s168 + $0x58] sm:$0xf]
        %v193 = vld [vmem:[%s168 + $0x5c] sm:$0xf]
        %v194 = vld [vmem:[%s168 + $0x60] sm:$0xf]
        %v195 = vld [vmem:[%s168 + $0x64] sm:$0xf]
        %v196 = vld [vmem:[%s168 + $0x68] sm:$0xf]
        %v197 = vld [vmem:[%s168 + $0x6c] sm:$0xf]
        %v198 = vld [vmem:[%s168 + $0x70] sm:$0xf]
        %v199 = vld [vmem:[%s168 + $0x74] sm:$0xf]
        %v200 = vld [vmem:[%s168 + $0x78] sm:$0xf]
        %v201 = vld [vmem:[%s168 + $0x7c] sm:$0xf]
        %vm202 = vcmask 19456
        %203 = vst.msk [vmem:[#allocation2] sm:$0xf] %vm202, 0
        %204 = vst.msk [vmem:[#allocation2 + $0x4] sm:$0xf] %vm202, 0
        %vm205 = vcmask 16384
        %206 = vst.msk [vmem:[#allocation2 + $0x8] sm:$0x1] %vm205, 0
        %207 = vst.msk [vmem:[#allocation2 + $0xc] sm:$0xf] %vm202, 0
        %208 = vst.msk [vmem:[#allocation2 + $0x10] sm:$0xf] %vm202, 0
        %209 = vst.msk [vmem:[#allocation2 + $0x14] sm:$0x1] %vm205, 0
        %210 = vst.msk [vmem:[#allocation2 + $0x18] sm:$0xf] %vm202, 0
        %211 = vst.msk [vmem:[#allocation2 + $0x1c] sm:$0xf] %vm202, 0
        %212 = vst.msk [vmem:[#allocation2 + $0x20] sm:$0x1] %vm205, 0
        %213 = vst.msk [vmem:[#allocation2 + $0x24] sm:$0xf] %vm202, 0
        %214 = vst.msk [vmem:[#allocation2 + $0x28] sm:$0xf] %vm202, 0
        %215 = vst.msk [vmem:[#allocation2 + $0x2c] sm:$0x1] %vm205, 0
        %216 = vst.msk [vmem:[#allocation2 + $0x30] sm:$0xf] %vm202, 0
        %217 = vst.msk [vmem:[#allocation2 + $0x34] sm:$0xf] %vm202, 0
        %218 = vst.msk [vmem:[#allocation2 + $0x38] sm:$0x1] %vm205, 0
        %219 = vst.msk [vmem:[#allocation2 + $0x3c] sm:$0xf] %vm202, 0
        %220 = vst.msk [vmem:[#allocation2 + $0x40] sm:$0xf] %vm202, 0
        %221 = vst.msk [vmem:[#allocation2 + $0x44] sm:$0x1] %vm205, 0
        %222 = vst.msk [vmem:[#allocation2 + $0x48] sm:$0xf] %vm202, 0
        %223 = vst.msk [vmem:[#allocation2 + $0x4c] sm:$0xf] %vm202, 0
        %224 = vst.msk [vmem:[#allocation2 + $0x50] sm:$0x1] %vm205, 0
        %225 = vst.msk [vmem:[#allocation2 + $0x54] sm:$0xf] %vm202, 0
        %226 = vst.msk [vmem:[#allocation2 + $0x58] sm:$0xf] %vm202, 0
        %227 = vst.msk [vmem:[#allocation2 + $0x5c] sm:$0x1] %vm205, 0
        %228 = vst.msk [vmem:[#allocation2 + $0x60] sm:$0xf] %vm202, 0
        %229 = vst.msk [vmem:[#allocation2 + $0x64] sm:$0xf] %vm202, 0
        %230 = vst.msk [vmem:[#allocation2 + $0x68] sm:$0x1] %vm205, 0
        %231 = vst.msk [vmem:[#allocation2 + $0x6c] sm:$0xf] %vm202, 0
        %232 = vst.msk [vmem:[#allocation2 + $0x70] sm:$0xf] %vm202, 0
        %233 = vst.msk [vmem:[#allocation2 + $0x74] sm:$0x1] %vm205, 0
        %234 = vst.msk [vmem:[#allocation2 + $0x78] sm:$0xf] %vm202, 0
        %235 = vst.msk [vmem:[#allocation2 + $0x7c] sm:$0xf] %vm202, 0
        %236 = vst.msk [vmem:[#allocation2 + $0x80] sm:$0x1] %vm205, 0
        %237 = vst.msk [vmem:[#allocation2 + $0x84] sm:$0xf] %vm202, 0
        %238 = vst.msk [vmem:[#allocation2 + $0x88] sm:$0xf] %vm202, 0
        %239 = vst.msk [vmem:[#allocation2 + $0x8c] sm:$0x1] %vm205, 0
        %240 = vst.msk [vmem:[#allocation2 + $0x90] sm:$0xf] %vm202, 0
        %241 = vst.msk [vmem:[#allocation2 + $0x94] sm:$0xf] %vm202, 0
        %242 = vst.msk [vmem:[#allocation2 + $0x98] sm:$0x1] %vm205, 0
        %243 = vst.msk [vmem:[#allocation2 + $0x9c] sm:$0xf] %vm202, 0
        %244 = vst.msk [vmem:[#allocation2 + $0xa0] sm:$0xf] %vm202, 0
        %245 = vst.msk [vmem:[#allocation2 + $0xa4] sm:$0x1] %vm205, 0
        %246 = vst.msk [vmem:[#allocation2 + $0xa8] sm:$0xf] %vm202, 0
        %247 = vst.msk [vmem:[#allocation2 + $0xac] sm:$0xf] %vm202, 0
        %248 = vst.msk [vmem:[#allocation2 + $0xb0] sm:$0x1] %vm205, 0
        %249 = vst.msk [vmem:[#allocation2 + $0xb4] sm:$0xf] %vm202, 0
        %250 = vst.msk [vmem:[#allocation2 + $0xb8] sm:$0xf] %vm202, 0
        %251 = vst.msk [vmem:[#allocation2 + $0xbc] sm:$0x1] %vm205, 0
        %252 = vst.msk [vmem:[#allocation2 + $0xc0] sm:$0xf] %vm202, 0
        %253 = vst.msk [vmem:[#allocation2 + $0xc4] sm:$0xf] %vm202, 0
        %254 = vst.msk [vmem:[#allocation2 + $0xc8] sm:$0x1] %vm205, 0
        %255 = vst.msk [vmem:[#allocation2 + $0xcc] sm:$0xf] %vm202, 0
        %256 = vst.msk [vmem:[#allocation2 + $0xd0] sm:$0xf] %vm202, 0
        %257 = vst.msk [vmem:[#allocation2 + $0xd4] sm:$0x1] %vm205, 0
        %vm258 = vsmask.f32 256
        %vm259 = vsmask.f32 4368
        %vm260 = vmor %vm258, %vm259
        %v262 = vshrl.u32 %v170, 16
        %v264 = vrot.slane %v262, 7
        %v265 = vshll.u32 %v170, 16
        %v267 = vor.u32 %v264, %v265
        %v268 = vrot.slane %v264, 4
        %v270 = vshrl.u32 %v171, 16
        %v272 = vrot.slane %v270, 7
        %v273 = vshll.u32 %v171, 16
        %v275 = vor.u32 %v272, %v273
        %v276 = vsel %vm260, %v268, %v275
        %v277 = vrot.slane %v272, 4
        %v279 = vshrl.u32 %v172, 16
        %v281 = vrot.slane %v279, 7
        %v282 = vshll.u32 %v172, 16
        %v284 = vor.u32 %v281, %v282
        %v285 = vrot.slane %v281, 4
        %v287 = vshrl.u32 %v173, 16
        %v289 = vrot.slane %v287, 7
        %v290 = vshll.u32 %v173, 16
        %v292 = vor.u32 %v289, %v290
        %v293 = vsel %vm260, %v285, %v292
        %v294 = vrot.slane %v289, 4
        %v296 = vshrl.u32 %v174, 16
        %v298 = vrot.slane %v296, 7
        %v299 = vshll.u32 %v174, 16
        %v301 = vor.u32 %v298, %v299
        %v302 = vrot.slane %v298, 4
        %v304 = vshrl.u32 %v175, 16
        %v306 = vrot.slane %v304, 7
        %v307 = vshll.u32 %v175, 16
        %v309 = vor.u32 %v306, %v307
        %v310 = vsel %vm260, %v302, %v309
        %v311 = vrot.slane %v306, 4
        %v313 = vshrl.u32 %v176, 16
        %v315 = vrot.slane %v313, 7
        %v316 = vshll.u32 %v176, 16
        %v318 = vor.u32 %v315, %v316
        %v319 = vrot.slane %v315, 4
        %v321 = vshrl.u32 %v177, 16
        %v323 = vrot.slane %v321, 7
        %v324 = vshll.u32 %v177, 16
        %v326 = vor.u32 %v323, %v324
        %v327 = vsel %vm260, %v319, %v326
        %v328 = vrot.slane %v323, 4
        %v330 = vshrl.u32 %v178, 16
        %v332 = vrot.slane %v330, 7
        %v333 = vshll.u32 %v178, 16
        %v335 = vor.u32 %v332, %v333
        %v336 = vrot.slane %v332, 4
        %v338 = vshrl.u32 %v179, 16
        %v340 = vrot.slane %v338, 7
        %v341 = vshll.u32 %v179, 16
        %v343 = vor.u32 %v340, %v341
        %v344 = vsel %vm260, %v336, %v343
        %v345 = vrot.slane %v340, 4
        %v347 = vshrl.u32 %v180, 16
        %v349 = vrot.slane %v347, 7
        %v350 = vshll.u32 %v180, 16
        %v352 = vor.u32 %v349, %v350
        %v353 = vrot.slane %v349, 4
        %v355 = vshrl.u32 %v181, 16
        %v357 = vrot.slane %v355, 7
        %v358 = vshll.u32 %v181, 16
        %v360 = vor.u32 %v357, %v358
        %v361 = vsel %vm260, %v353, %v360
        %v362 = vrot.slane %v357, 4
        %v364 = vshrl.u32 %v182, 16
        %v366 = vrot.slane %v364, 7
        %v367 = vshll.u32 %v182, 16
        %v369 = vor.u32 %v366, %v367
        %v370 = vrot.slane %v366, 4
        %v372 = vshrl.u32 %v183, 16
        %v374 = vrot.slane %v372, 7
        %v375 = vshll.u32 %v183, 16
        %v377 = vor.u32 %v374, %v375
        %v378 = vsel %vm260, %v370, %v377
        %v379 = vrot.slane %v374, 4
        %v381 = vshrl.u32 %v184, 16
        %v383 = vrot.slane %v381, 7
        %v384 = vshll.u32 %v184, 16
        %v386 = vor.u32 %v383, %v384
        %v387 = vrot.slane %v383, 4
        %v389 = vshrl.u32 %v185, 16
        %v391 = vrot.slane %v389, 7
        %v392 = vshll.u32 %v185, 16
        %v394 = vor.u32 %v391, %v392
        %v395 = vsel %vm260, %v387, %v394
        %v396 = vrot.slane %v391, 4
        %v398 = vshrl.u32 %v186, 16
        %v400 = vrot.slane %v398, 7
        %v401 = vshll.u32 %v186, 16
        %v403 = vor.u32 %v400, %v401
        %v404 = vrot.slane %v400, 4
        %v406 = vshrl.u32 %v187, 16
        %v408 = vrot.slane %v406, 7
        %v409 = vshll.u32 %v187, 16
        %v411 = vor.u32 %v408, %v409
        %v412 = vsel %vm260, %v404, %v411
        %v413 = vrot.slane %v408, 4
        %v415 = vshrl.u32 %v188, 16
        %v417 = vrot.slane %v415, 7
        %v418 = vshll.u32 %v188, 16
        %v420 = vor.u32 %v417, %v418
        %v421 = vrot.slane %v417, 4
        %v423 = vshrl.u32 %v189, 16
        %v425 = vrot.slane %v423, 7
        %v426 = vshll.u32 %v189, 16
        %v428 = vor.u32 %v425, %v426
        %v429 = vsel %vm260, %v421, %v428
        %v430 = vrot.slane %v425, 4
        %v432 = vshrl.u32 %v190, 16
        %v434 = vrot.slane %v432, 7
        %v435 = vshll.u32 %v190, 16
        %v437 = vor.u32 %v434, %v435
        %v438 = vrot.slane %v434, 4
        %v440 = vshrl.u32 %v191, 16
        %v442 = vrot.slane %v440, 7
        %v443 = vshll.u32 %v191, 16
        %v445 = vor.u32 %v442, %v443
        %v446 = vsel %vm260, %v438, %v445
        %v447 = vrot.slane %v442, 4
        %v449 = vshrl.u32 %v192, 16
        %v451 = vrot.slane %v449, 7
        %v452 = vshll.u32 %v192, 16
        %v454 = vor.u32 %v451, %v452
        %v455 = vrot.slane %v451, 4
        %v457 = vshrl.u32 %v193, 16
        %v459 = vrot.slane %v457, 7
        %v460 = vshll.u32 %v193, 16
        %v462 = vor.u32 %v459, %v460
        %v463 = vsel %vm260, %v455, %v462
        %v464 = vrot.slane %v459, 4
        %v466 = vshrl.u32 %v194, 16
        %v468 = vrot.slane %v466, 7
        %v469 = vshll.u32 %v194, 16
        %v471 = vor.u32 %v468, %v469
        %v472 = vrot.slane %v468, 4
        %v474 = vshrl.u32 %v195, 16
        %v476 = vrot.slane %v474, 7
        %v477 = vshll.u32 %v195, 16
        %v479 = vor.u32 %v476, %v477
        %v480 = vsel %vm260, %v472, %v479
        %v481 = vrot.slane %v476, 4
        %v483 = vshrl.u32 %v196, 16
        %v485 = vrot.slane %v483, 7
        %v486 = vshll.u32 %v196, 16
        %v488 = vor.u32 %v485, %v486
        %v489 = vrot.slane %v485, 4
        %v491 = vshrl.u32 %v197, 16
        %v493 = vrot.slane %v491, 7
        %v494 = vshll.u32 %v197, 16
        %v496 = vor.u32 %v493, %v494
        %v497 = vsel %vm260, %v489, %v496
        %v498 = vrot.slane %v493, 4
        %v500 = vshrl.u32 %v198, 16
        %v502 = vrot.slane %v500, 7
        %v503 = vshll.u32 %v198, 16
        %v505 = vor.u32 %v502, %v503
        %v506 = vrot.slane %v502, 4
        %v508 = vshrl.u32 %v199, 16
        %v510 = vrot.slane %v508, 7
        %v511 = vshll.u32 %v199, 16
        %v513 = vor.u32 %v510, %v511
        %v514 = vsel %vm260, %v506, %v513
        %v515 = vrot.slane %v510, 4
        %v517 = vshrl.u32 %v200, 16
        %v519 = vrot.slane %v517, 7
        %v520 = vshll.u32 %v200, 16
        %v522 = vor.u32 %v519, %v520
        %v523 = vrot.slane %v519, 4
        %v525 = vshrl.u32 %v201, 16
        %v527 = vrot.slane %v525, 7
        %v528 = vshll.u32 %v201, 16
        %v530 = vor.u32 %v527, %v528
        %v531 = vsel %vm260, %v523, %v530
        %v532 = vrot.slane %v527, 4
        %s581 = scalar_lea.vmem [#allocation2], 12
        %vm582 = vcmask 19456
        %vm583 = vsmask.f32 7938
        %vm584 = vmand %vm582, %vm583
        %v585 = vld [vmem:[%s581] sm:$0xf]
        %v586 = vsel %vm584, %v267, %v585
        %587 = vst [vmem:[%s581] sm:$0xf] %v586
        %588 = vst.msk [vmem:[%s581 + $0x4] sm:$0xf] %vm202, %v276
        %vm589 = vcmask 16384
        %vm590 = vmand %vm589, %vm258
        %v591 = vld [vmem:[%s581 + $0x8] sm:$0x1]
        %v592 = vsel %vm590, %v277, %v591
        %593 = vst [vmem:[%s581 + $0x8] sm:$0x1] %v592
        %v594 = vld [vmem:[%s581 + $0xc] sm:$0xf]
        %v595 = vsel %vm584, %v284, %v594
        %596 = vst [vmem:[%s581 + $0xc] sm:$0xf] %v595
        %597 = vst.msk [vmem:[%s581 + $0x10] sm:$0xf] %vm202, %v293
        %v598 = vld [vmem:[%s581 + $0x14] sm:$0x1]
        %v599 = vsel %vm590, %v294, %v598
        %600 = vst [vmem:[%s581 + $0x14] sm:$0x1] %v599
        %v601 = vld [vmem:[%s581 + $0x18] sm:$0xf]
        %v602 = vsel %vm584, %v301, %v601
        %603 = vst [vmem:[%s581 + $0x18] sm:$0xf] %v602
        %604 = vst.msk [vmem:[%s581 + $0x1c] sm:$0xf] %vm202, %v310
        %v605 = vld [vmem:[%s581 + $0x20] sm:$0x1]
        %v606 = vsel %vm590, %v311, %v605
        %607 = vst [vmem:[%s581 + $0x20] sm:$0x1] %v606
        %v608 = vld [vmem:[%s581 + $0x24] sm:$0xf]
        %v609 = vsel %vm584, %v318, %v608
        %610 = vst [vmem:[%s581 + $0x24] sm:$0xf] %v609
        %611 = vst.msk [vmem:[%s581 + $0x28] sm:$0xf] %vm202, %v327
        %v612 = vld [vmem:[%s581 + $0x2c] sm:$0x1]
        %v613 = vsel %vm590, %v328, %v612
        %614 = vst [vmem:[%s581 + $0x2c] sm:$0x1] %v613
        %v615 = vld [vmem:[%s581 + $0x30] sm:$0xf]
        %v616 = vsel %vm584, %v335, %v615
        %617 = vst [vmem:[%s581 + $0x30] sm:$0xf] %v616
        %618 = vst.msk [vmem:[%s581 + $0x34] sm:$0xf] %vm202, %v344
        %v619 = vld [vmem:[%s581 + $0x38] sm:$0x1]
        %v620 = vsel %vm590, %v345, %v619
        %621 = vst [vmem:[%s581 + $0x38] sm:$0x1] %v620
        %v622 = vld [vmem:[%s581 + $0x3c] sm:$0xf]
        %v623 = vsel %vm584, %v352, %v622
        %624 = vst [vmem:[%s581 + $0x3c] sm:$0xf] %v623
        %625 = vst.msk [vmem:[%s581 + $0x40] sm:$0xf] %vm202, %v361
        %v626 = vld [vmem:[%s581 + $0x44] sm:$0x1]
        %v627 = vsel %vm590, %v362, %v626
        %628 = vst [vmem:[%s581 + $0x44] sm:$0x1] %v627
        %v629 = vld [vmem:[%s581 + $0x48] sm:$0xf]
        %v630 = vsel %vm584, %v369, %v629
        %631 = vst [vmem:[%s581 + $0x48] sm:$0xf] %v630
        %632 = vst.msk [vmem:[%s581 + $0x4c] sm:$0xf] %vm202, %v378
        %v633 = vld [vmem:[%s581 + $0x50] sm:$0x1]
        %v634 = vsel %vm590, %v379, %v633
        %635 = vst [vmem:[%s581 + $0x50] sm:$0x1] %v634
        %v636 = vld [vmem:[%s581 + $0x54] sm:$0xf]
        %v637 = vsel %vm584, %v386, %v636
        %638 = vst [vmem:[%s581 + $0x54] sm:$0xf] %v637
        %639 = vst.msk [vmem:[%s581 + $0x58] sm:$0xf] %vm202, %v395
        %v640 = vld [vmem:[%s581 + $0x5c] sm:$0x1]
        %v641 = vsel %vm590, %v396, %v640
        %642 = vst [vmem:[%s581 + $0x5c] sm:$0x1] %v641
        %v643 = vld [vmem:[%s581 + $0x60] sm:$0xf]
        %v644 = vsel %vm584, %v403, %v643
        %645 = vst [vmem:[%s581 + $0x60] sm:$0xf] %v644
        %646 = vst.msk [vmem:[%s581 + $0x64] sm:$0xf] %vm202, %v412
        %v647 = vld [vmem:[%s581 + $0x68] sm:$0x1]
        %v648 = vsel %vm590, %v413, %v647
        %649 = vst [vmem:[%s581 + $0x68] sm:$0x1] %v648
        %v650 = vld [vmem:[%s581 + $0x6c] sm:$0xf]
        %v651 = vsel %vm584, %v420, %v650
        %652 = vst [vmem:[%s581 + $0x6c] sm:$0xf] %v651
        %653 = vst.msk [vmem:[%s581 + $0x70] sm:$0xf] %vm202, %v429
        %v654 = vld [vmem:[%s581 + $0x74] sm:$0x1]
        %v655 = vsel %vm590, %v430, %v654
        %656 = vst [vmem:[%s581 + $0x74] sm:$0x1] %v655
        %v657 = vld [vmem:[%s581 + $0x78] sm:$0xf]
        %v658 = vsel %vm584, %v437, %v657
        %659 = vst [vmem:[%s581 + $0x78] sm:$0xf] %v658
        %660 = vst.msk [vmem:[%s581 + $0x7c] sm:$0xf] %vm202, %v446
        %v661 = vld [vmem:[%s581 + $0x80] sm:$0x1]
        %v662 = vsel %vm590, %v447, %v661
        %663 = vst [vmem:[%s581 + $0x80] sm:$0x1] %v662
        %v664 = vld [vmem:[%s581 + $0x84] sm:$0xf]
        %v665 = vsel %vm584, %v454, %v664
        %666 = vst [vmem:[%s581 + $0x84] sm:$0xf] %v665
        %667 = vst.msk [vmem:[%s581 + $0x88] sm:$0xf] %vm202, %v463
        %v668 = vld [vmem:[%s581 + $0x8c] sm:$0x1]
        %v669 = vsel %vm590, %v464, %v668
        %670 = vst [vmem:[%s581 + $0x8c] sm:$0x1] %v669
        %v671 = vld [vmem:[%s581 + $0x90] sm:$0xf]
        %v672 = vsel %vm584, %v471, %v671
        %673 = vst [vmem:[%s581 + $0x90] sm:$0xf] %v672
        %674 = vst.msk [vmem:[%s581 + $0x94] sm:$0xf] %vm202, %v480
        %v675 = vld [vmem:[%s581 + $0x98] sm:$0x1]
        %v676 = vsel %vm590, %v481, %v675
        %677 = vst [vmem:[%s581 + $0x98] sm:$0x1] %v676
        %v678 = vld [vmem:[%s581 + $0x9c] sm:$0xf]
        %v679 = vsel %vm584, %v488, %v678
        %680 = vst [vmem:[%s581 + $0x9c] sm:$0xf] %v679
        %681 = vst.msk [vmem:[%s581 + $0xa0] sm:$0xf] %vm202, %v497
        %v682 = vld [vmem:[%s581 + $0xa4] sm:$0x1]
        %v683 = vsel %vm590, %v498, %v682
        %684 = vst [vmem:[%s581 + $0xa4] sm:$0x1] %v683
        %v685 = vld [vmem:[%s581 + $0xa8] sm:$0xf]
        %v686 = vsel %vm584, %v505, %v685
        %687 = vst [vmem:[%s581 + $0xa8] sm:$0xf] %v686
        %688 = vst.msk [vmem:[%s581 + $0xac] sm:$0xf] %vm202, %v514
        %v689 = vld [vmem:[%s581 + $0xb0] sm:$0x1]
        %v690 = vsel %vm590, %v515, %v689
        %691 = vst [vmem:[%s581 + $0xb0] sm:$0x1] %v690
        %v692 = vld [vmem:[%s581 + $0xb4] sm:$0xf]
        %v693 = vsel %vm584, %v522, %v692
        %694 = vst [vmem:[%s581 + $0xb4] sm:$0xf] %v693
        %695 = vst.msk [vmem:[%s581 + $0xb8] sm:$0xf] %vm202, %v531
        %v696 = vld [vmem:[%s581 + $0xbc] sm:$0x1]
        %v697 = vsel %vm590, %v532, %v696
        %698 = vst [vmem:[%s581 + $0xbc] sm:$0x1] %v697
        %v699 = vld [vmem:[#allocation2] sm:$0xf]
        %v700 = vld [vmem:[#allocation2 + $0x4] sm:$0xf]
        %v701 = vld [vmem:[#allocation2 + $0xc] sm:$0xf]
        %v702 = vld [vmem:[#allocation2 + $0x10] sm:$0xf]
        %v703 = vld [vmem:[#allocation2 + $0x18] sm:$0xf]
        %v704 = vld [vmem:[#allocation2 + $0x1c] sm:$0xf]
        %v705 = vld [vmem:[#allocation2 + $0x24] sm:$0xf]
        %v706 = vld [vmem:[#allocation2 + $0x28] sm:$0xf]
        %v707 = vld [vmem:[#allocation2 + $0x30] sm:$0xf]
        %v708 = vld [vmem:[#allocation2 + $0x34] sm:$0xf]
        %v709 = vld [vmem:[#allocation2 + $0x3c] sm:$0xf]
        %v710 = vld [vmem:[#allocation2 + $0x40] sm:$0xf]
        %v711 = vld [vmem:[#allocation2 + $0x48] sm:$0xf]
        %v712 = vld [vmem:[#allocation2 + $0x4c] sm:$0xf]
        %v713 = vld [vmem:[#allocation2 + $0x54] sm:$0xf]
        %v714 = vld [vmem:[#allocation2 + $0x58] sm:$0xf]
        %v715 = vld [vmem:[#allocation2 + $0x60] sm:$0xf]
        %v716 = vld [vmem:[#allocation2 + $0x64] sm:$0xf]
        %v717 = vld [vmem:[#allocation2 + $0x6c] sm:$0xf]
        %v718 = vld [vmem:[#allocation2 + $0x70] sm:$0xf]
        %v719 = vld [vmem:[#allocation2 + $0x78] sm:$0xf]
        %v720 = vld [vmem:[#allocation2 + $0x7c] sm:$0xf]
        %v721 = vld [vmem:[#allocation2 + $0x84] sm:$0xf]
        %v722 = vld [vmem:[#allocation2 + $0x88] sm:$0xf]
        %v723 = vld [vmem:[#allocation2 + $0x90] sm:$0xf]
        %v724 = vld [vmem:[#allocation2 + $0x94] sm:$0xf]
        %v725 = vld [vmem:[#allocation2 + $0x9c] sm:$0xf]
        %v726 = vld [vmem:[#allocation2 + $0xa0] sm:$0xf]
        %v727 = vld [vmem:[#allocation2 + $0xa8] sm:$0xf]
        %v728 = vld [vmem:[#allocation2 + $0xac] sm:$0xf]
        %v729 = vld [vmem:[#allocation2 + $0xb4] sm:$0xf]
        %v730 = vld [vmem:[#allocation2 + $0xb8] sm:$0xf]
        %v731 = vld [vmem:[#allocation2 + $0xc0] sm:$0xf]
        %v732 = vld [vmem:[#allocation2 + $0xc4] sm:$0xf]
        %v733 = vld [vmem:[#allocation2 + $0xcc] sm:$0xf]
        %v734 = vld [vmem:[#allocation2 + $0xd0] sm:$0xf]
        %v735 = vld [vmem:[#allocation2 + $0x8] sm:$0x1]
        %v736 = vld [vmem:[#allocation2 + $0x14] sm:$0x1]
        %v737 = vld [vmem:[#allocation2 + $0x20] sm:$0x1]
        %v738 = vld [vmem:[#allocation2 + $0x2c] sm:$0x1]
        %v739 = vld [vmem:[#allocation2 + $0x38] sm:$0x1]
        %v740 = vld [vmem:[#allocation2 + $0x44] sm:$0x1]
        %v741 = vld [vmem:[#allocation2 + $0x50] sm:$0x1]
        %v742 = vld [vmem:[#allocation2 + $0x5c] sm:$0x1]
        %v743 = vld [vmem:[#allocation2 + $0x68] sm:$0x1]
        %v744 = vld [vmem:[#allocation2 + $0x74] sm:$0x1]
        %v745 = vld [vmem:[#allocation2 + $0x80] sm:$0x1]
        %v746 = vld [vmem:[#allocation2 + $0x8c] sm:$0x1]
        %v747 = vld [vmem:[#allocation2 + $0x98] sm:$0x1]
        %v748 = vld [vmem:[#allocation2 + $0xa4] sm:$0x1]
        %v749 = vld [vmem:[#allocation2 + $0xb0] sm:$0x1]
        %v750 = vld [vmem:[#allocation2 + $0xbc] sm:$0x1]
        %v751 = vld [vmem:[#allocation2 + $0xc8] sm:$0x1]
        %v752 = vld [vmem:[#allocation2 + $0xd4] sm:$0x1]
        %v753 = vld [vmem:[#allocation2] sm:$0xe]
        %v754 = vld [vmem:[#allocation2 + $0xc] sm:$0xe]
        %v755 = vld [vmem:[#allocation2 + $0x18] sm:$0xe]
        %v756 = vld [vmem:[#allocation2 + $0x24] sm:$0xe]
        %v757 = vld [vmem:[#allocation2 + $0x30] sm:$0xe]
        %v758 = vld [vmem:[#allocation2 + $0x3c] sm:$0xe]
        %v759 = vld [vmem:[#allocation2 + $0x48] sm:$0xe]
        %v760 = vld [vmem:[#allocation2 + $0x54] sm:$0xe]
        %v761 = vld [vmem:[#allocation2 + $0x60] sm:$0xe]
        %v762 = vld [vmem:[#allocation2 + $0x6c] sm:$0xe]
        %v763 = vld [vmem:[#allocation2 + $0x78] sm:$0xe]
        %v764 = vld [vmem:[#allocation2 + $0x84] sm:$0xe]
        %v765 = vld [vmem:[#allocation2 + $0x90] sm:$0xe]
        %v766 = vld [vmem:[#allocation2 + $0x9c] sm:$0xe]
        %v767 = vld [vmem:[#allocation2 + $0xa8] sm:$0xe]
        %v768 = vld [vmem:[#allocation2 + $0xb4] sm:$0xe]
        %v769 = vld [vmem:[#allocation2 + $0xc0] sm:$0xe]
        %v770 = vld [vmem:[#allocation2 + $0xcc] sm:$0xe]
        %v807 = vunpack.c.l.b16 %v699
        %v808 = vunpack.c.l.b16 %v700
        %v809 = vunpack.c.l.b16 %v701
        %v810 = vunpack.c.l.b16 %v702
        %v811 = vunpack.c.l.b16 %v703
        %v812 = vunpack.c.l.b16 %v704
        %v813 = vunpack.c.l.b16 %v705
        %v814 = vunpack.c.l.b16 %v706
        %v815 = vunpack.c.l.b16 %v707
        %v816 = vunpack.c.l.b16 %v708
        %v817 = vunpack.c.l.b16 %v709
        %v818 = vunpack.c.l.b16 %v710
        %v819 = vunpack.c.l.b16 %v711
        %v820 = vunpack.c.l.b16 %v712
        %v821 = vunpack.c.l.b16 %v713
        %v822 = vunpack.c.l.b16 %v714
        %v823 = vunpack.c.l.b16 %v715
        %v824 = vunpack.c.l.b16 %v716
        %v825 = vunpack.c.l.b16 %v717
        %v826 = vunpack.c.l.b16 %v718
        %v827 = vunpack.c.l.b16 %v719
        %v828 = vunpack.c.l.b16 %v720
        %v829 = vunpack.c.l.b16 %v721
        %v830 = vunpack.c.l.b16 %v722
        %v831 = vunpack.c.l.b16 %v723
        %v832 = vunpack.c.l.b16 %v724
        %v833 = vunpack.c.l.b16 %v725
        %v834 = vunpack.c.l.b16 %v726
        %v835 = vunpack.c.l.b16 %v727
        %v836 = vunpack.c.l.b16 %v728
        %v837 = vunpack.c.l.b16 %v729
        %v838 = vunpack.c.l.b16 %v730
        %v839 = vunpack.c.l.b16 %v731
        %v840 = vunpack.c.l.b16 %v732
        %v841 = vunpack.c.l.b16 %v733
        %v842 = vunpack.c.l.b16 %v734
        %v843 = vpack.c.b16 %v808, %v807
        %v844 = vpack.c.b16 %v810, %v809
        %v845 = vpack.c.b16 %v812, %v811
        %v846 = vpack.c.b16 %v814, %v813
        %v847 = vpack.c.b16 %v816, %v815
        %v848 = vpack.c.b16 %v818, %v817
        %v849 = vpack.c.b16 %v820, %v819
        %v850 = vpack.c.b16 %v822, %v821
        %v851 = vpack.c.b16 %v824, %v823
        %v852 = vpack.c.b16 %v826, %v825
        %v853 = vpack.c.b16 %v828, %v827
        %v854 = vpack.c.b16 %v830, %v829
        %v855 = vpack.c.b16 %v832, %v831
        %v856 = vpack.c.b16 %v834, %v833
        %v857 = vpack.c.b16 %v836, %v835
        %v858 = vpack.c.b16 %v838, %v837
        %v859 = vpack.c.b16 %v840, %v839
        %v860 = vpack.c.b16 %v842, %v841
        %v879 = vunpack.c.l.b16 %v735
        %v880 = vunpack.c.l.b16 %v736
        %v881 = vunpack.c.l.b16 %v737
        %v882 = vunpack.c.l.b16 %v738
        %v883 = vunpack.c.l.b16 %v739
        %v884 = vunpack.c.l.b16 %v740
        %v885 = vunpack.c.l.b16 %v741
        %v886 = vunpack.c.l.b16 %v742
        %v887 = vunpack.c.l.b16 %v743
        %v888 = vunpack.c.l.b16 %v744
        %v889 = vunpack.c.l.b16 %v745
        %v890 = vunpack.c.l.b16 %v746
        %v891 = vunpack.c.l.b16 %v747
        %v892 = vunpack.c.l.b16 %v748
        %v893 = vunpack.c.l.b16 %v749
        %v894 = vunpack.c.l.b16 %v750
        %v895 = vunpack.c.l.b16 %v751
        %v896 = vunpack.c.l.b16 %v752
        %v897 = vpack.c.b16 %v879, %v879
        %v898 = vpack.c.b16 %v880, %v880
        %v899 = vpack.c.b16 %v881, %v881
        %v900 = vpack.c.b16 %v882, %v882
        %v901 = vpack.c.b16 %v883, %v883
        %v902 = vpack.c.b16 %v884, %v884
        %v903 = vpack.c.b16 %v885, %v885
        %v904 = vpack.c.b16 %v886, %v886
        %v905 = vpack.c.b16 %v887, %v887
        %v906 = vpack.c.b16 %v888, %v888
        %v907 = vpack.c.b16 %v889, %v889
        %v908 = vpack.c.b16 %v890, %v890
        %v909 = vpack.c.b16 %v891, %v891
        %v910 = vpack.c.b16 %v892, %v892
        %v911 = vpack.c.b16 %v893, %v893
        %v912 = vpack.c.b16 %v894, %v894
        %v913 = vpack.c.b16 %v895, %v895
        %v914 = vpack.c.b16 %v896, %v896
        %vm915 = vsmask.f32 7424
        %v917 = vshrl.u32 %v843, 16
        %v919 = vshll.u32 %v843, 16
        %v921 = vrot.slane %v919, 1
        %v922 = vor.u32 %v917, %v921
        %v924 = vshll.u32 %v897, 16
        %v926 = vrot.slane %v924, 1
        %v927 = vsel %vm915, %v922, %v926
        %v929 = vshrl.u32 %v844, 16
        %v931 = vshll.u32 %v844, 16
        %v933 = vrot.slane %v931, 1
        %v934 = vor.u32 %v929, %v933
        %v936 = vshll.u32 %v898, 16
        %v938 = vrot.slane %v936, 1
        %v939 = vsel %vm915, %v934, %v938
        %v941 = vshrl.u32 %v845, 16
        %v943 = vshll.u32 %v845, 16
        %v945 = vrot.slane %v943, 1
        %v946 = vor.u32 %v941, %v945
        %v948 = vshll.u32 %v899, 16
        %v950 = vrot.slane %v948, 1
        %v951 = vsel %vm915, %v946, %v950
        %v953 = vshrl.u32 %v846, 16
        %v955 = vshll.u32 %v846, 16
        %v957 = vrot.slane %v955, 1
        %v958 = vor.u32 %v953, %v957
        %v960 = vshll.u32 %v900, 16
        %v962 = vrot.slane %v960, 1
        %v963 = vsel %vm915, %v958, %v962
        %v965 = vshrl.u32 %v847, 16
        %v967 = vshll.u32 %v847, 16
        %v969 = vrot.slane %v967, 1
        %v970 = vor.u32 %v965, %v969
        %v972 = vshll.u32 %v901, 16
        %v974 = vrot.slane %v972, 1
        %v975 = vsel %vm915, %v970, %v974
        %v977 = vshrl.u32 %v848, 16
        %v979 = vshll.u32 %v848, 16
        %v981 = vrot.slane %v979, 1
        %v982 = vor.u32 %v977, %v981
        %v984 = vshll.u32 %v902, 16
        %v986 = vrot.slane %v984, 1
        %v987 = vsel %vm915, %v982, %v986
        %v989 = vshrl.u32 %v849, 16
        %v991 = vshll.u32 %v849, 16
        %v993 = vrot.slane %v991, 1
        %v994 = vor.u32 %v989, %v993
        %v996 = vshll.u32 %v903, 16
        %v998 = vrot.slane %v996, 1
        %v999 = vsel %vm915, %v994, %v998
        %v1001 = vshrl.u32 %v850, 16
        %v1003 = vshll.u32 %v850, 16
        %v1005 = vrot.slane %v1003, 1
        %v1006 = vor.u32 %v1001, %v1005
        %v1008 = vshll.u32 %v904, 16
        %v1010 = vrot.slane %v1008, 1
        %v1011 = vsel %vm915, %v1006, %v1010
        %v1013 = vshrl.u32 %v851, 16
        %v1015 = vshll.u32 %v851, 16
        %v1017 = vrot.slane %v1015, 1
        %v1018 = vor.u32 %v1013, %v1017
        %v1020 = vshll.u32 %v905, 16
        %v1022 = vrot.slane %v1020, 1
        %v1023 = vsel %vm915, %v1018, %v1022
        %v1025 = vshrl.u32 %v852, 16
        %v1027 = vshll.u32 %v852, 16
        %v1029 = vrot.slane %v1027, 1
        %v1030 = vor.u32 %v1025, %v1029
        %v1032 = vshll.u32 %v906, 16
        %v1034 = vrot.slane %v1032, 1
        %v1035 = vsel %vm915, %v1030, %v1034
        %v1037 = vshrl.u32 %v853, 16
        %v1039 = vshll.u32 %v853, 16
        %v1041 = vrot.slane %v1039, 1
        %v1042 = vor.u32 %v1037, %v1041
        %v1044 = vshll.u32 %v907, 16
        %v1046 = vrot.slane %v1044, 1
        %v1047 = vsel %vm915, %v1042, %v1046
        %v1049 = vshrl.u32 %v854, 16
        %v1051 = vshll.u32 %v854, 16
        %v1053 = vrot.slane %v1051, 1
        %v1054 = vor.u32 %v1049, %v1053
        %v1056 = vshll.u32 %v908, 16
        %v1058 = vrot.slane %v1056, 1
        %v1059 = vsel %vm915, %v1054, %v1058
        %v1061 = vshrl.u32 %v855, 16
        %v1063 = vshll.u32 %v855, 16
        %v1065 = vrot.slane %v1063, 1
        %v1066 = vor.u32 %v1061, %v1065
        %v1068 = vshll.u32 %v909, 16
        %v1070 = vrot.slane %v1068, 1
        %v1071 = vsel %vm915, %v1066, %v1070
        %v1073 = vshrl.u32 %v856, 16
        %v1075 = vshll.u32 %v856, 16
        %v1077 = vrot.slane %v1075, 1
        %v1078 = vor.u32 %v1073, %v1077
        %v1080 = vshll.u32 %v910, 16
        %v1082 = vrot.slane %v1080, 1
        %v1083 = vsel %vm915, %v1078, %v1082
        %v1085 = vshrl.u32 %v857, 16
        %v1087 = vshll.u32 %v857, 16
        %v1089 = vrot.slane %v1087, 1
        %v1090 = vor.u32 %v1085, %v1089
        %v1092 = vshll.u32 %v911, 16
        %v1094 = vrot.slane %v1092, 1
        %v1095 = vsel %vm915, %v1090, %v1094
        %v1097 = vshrl.u32 %v858, 16
        %v1099 = vshll.u32 %v858, 16
        %v1101 = vrot.slane %v1099, 1
        %v1102 = vor.u32 %v1097, %v1101
        %v1104 = vshll.u32 %v912, 16
        %v1106 = vrot.slane %v1104, 1
        %v1107 = vsel %vm915, %v1102, %v1106
        %v1109 = vshrl.u32 %v859, 16
        %v1111 = vshll.u32 %v859, 16
        %v1113 = vrot.slane %v1111, 1
        %v1114 = vor.u32 %v1109, %v1113
        %v1116 = vshll.u32 %v913, 16
        %v1118 = vrot.slane %v1116, 1
        %v1119 = vsel %vm915, %v1114, %v1118
        %v1121 = vshrl.u32 %v860, 16
        %v1123 = vshll.u32 %v860, 16
        %v1125 = vrot.slane %v1123, 1
        %v1126 = vor.u32 %v1121, %v1125
        %v1128 = vshll.u32 %v914, 16
        %v1130 = vrot.slane %v1128, 1
        %v1131 = vsel %vm915, %v1126, %v1130
        %1132 = vrot.lane.b32.xlu0 %v927, 3
        %v1133 = vpop.permute.xlu0 %1132
        %1134 = vrot.lane.b32.xlu0 %v939, 3
        %v1135 = vpop.permute.xlu0 %1134
        %1136 = vrot.lane.b32.xlu0 %v951, 3
        %v1137 = vpop.permute.xlu0 %1136
        %1138 = vrot.lane.b32.xlu0 %v963, 3
        %v1139 = vpop.permute.xlu0 %1138
        %1140 = vrot.lane.b32.xlu0 %v975, 3
        %v1141 = vpop.permute.xlu0 %1140
        %1142 = vrot.lane.b32.xlu0 %v987, 3
        %v1143 = vpop.permute.xlu0 %1142
        %1144 = vrot.lane.b32.xlu0 %v999, 3
        %v1145 = vpop.permute.xlu0 %1144
        %1146 = vrot.lane.b32.xlu0 %v1011, 3
        %v1147 = vpop.permute.xlu0 %1146
        %1148 = vrot.lane.b32.xlu0 %v1023, 3
        %v1149 = vpop.permute.xlu0 %1148
        %1150 = vrot.lane.b32.xlu0 %v1035, 3
        %v1151 = vpop.permute.xlu0 %1150
        %1152 = vrot.lane.b32.xlu0 %v1047, 3
        %v1153 = vpop.permute.xlu0 %1152
        %1154 = vrot.lane.b32.xlu0 %v1059, 3
        %v1155 = vpop.permute.xlu0 %1154
        %1156 = vrot.lane.b32.xlu0 %v1071, 3
        %v1157 = vpop.permute.xlu0 %1156
        %1158 = vrot.lane.b32.xlu0 %v1083, 3
        %v1159 = vpop.permute.xlu0 %1158
        %1160 = vrot.lane.b32.xlu0 %v1095, 3
        %v1161 = vpop.permute.xlu0 %1160
        %1162 = vrot.lane.b32.xlu0 %v1107, 3
        %v1163 = vpop.permute.xlu0 %1162
        %1164 = vrot.lane.b32.xlu0 %v1119, 3
        %v1165 = vpop.permute.xlu0 %1164
        %1166 = vrot.lane.b32.xlu0 %v1131, 3
        %v1167 = vpop.permute.xlu0 %1166
        %v1186 = vunpack.c.l.b16 %v753
        %v1187 = vunpack.c.l.b16 %v754
        %v1188 = vunpack.c.l.b16 %v755
        %v1189 = vunpack.c.l.b16 %v756
        %v1190 = vunpack.c.l.b16 %v757
        %v1191 = vunpack.c.l.b16 %v758
        %v1192 = vunpack.c.l.b16 %v759
        %v1193 = vunpack.c.l.b16 %v760
        %v1194 = vunpack.c.l.b16 %v761
        %v1195 = vunpack.c.l.b16 %v762
        %v1196 = vunpack.c.l.b16 %v763
        %v1197 = vunpack.c.l.b16 %v764
        %v1198 = vunpack.c.l.b16 %v765
        %v1199 = vunpack.c.l.b16 %v766
        %v1200 = vunpack.c.l.b16 %v767
        %v1201 = vunpack.c.l.b16 %v768
        %v1202 = vunpack.c.l.b16 %v769
        %v1203 = vunpack.c.l.b16 %v770
        %v1204 = vpack.c.b16 %v808, %v1186
        %v1205 = vpack.c.b16 %v810, %v1187
        %v1206 = vpack.c.b16 %v812, %v1188
        %v1207 = vpack.c.b16 %v814, %v1189
        %v1208 = vpack.c.b16 %v816, %v1190
        %v1209 = vpack.c.b16 %v818, %v1191
        %v1210 = vpack.c.b16 %v820, %v1192
        %v1211 = vpack.c.b16 %v822, %v1193
        %v1212 = vpack.c.b16 %v824, %v1194
        %v1213 = vpack.c.b16 %v826, %v1195
        %v1214 = vpack.c.b16 %v828, %v1196
        %v1215 = vpack.c.b16 %v830, %v1197
        %v1216 = vpack.c.b16 %v832, %v1198
        %v1217 = vpack.c.b16 %v834, %v1199
        %v1218 = vpack.c.b16 %v836, %v1200
        %v1219 = vpack.c.b16 %v838, %v1201
        %v1220 = vpack.c.b16 %v840, %v1202
        %v1221 = vpack.c.b16 %v842, %v1203
        %vm1222 = vcmask 1046528
        %v1223 = vrot.slane %v1204, 1
        %v1224 = vrot.slane %v897, 1
        %v1225 = vsel %vm1222, %v1223, %v1224
        %v1226 = vrot.slane %v1205, 1
        %v1227 = vrot.slane %v898, 1
        %v1228 = vsel %vm1222, %v1226, %v1227
        %v1229 = vrot.slane %v1206, 1
        %v1230 = vrot.slane %v899, 1
        %v1231 = vsel %vm1222, %v1229, %v1230
        %v1232 = vrot.slane %v1207, 1
        %v1233 = vrot.slane %v900, 1
        %v1234 = vsel %vm1222, %v1232, %v1233
        %v1235 = vrot.slane %v1208, 1
        %v1236 = vrot.slane %v901, 1
        %v1237 = vsel %vm1222, %v1235, %v1236
        %v1238 = vrot.slane %v1209, 1
        %v1239 = vrot.slane %v902, 1
        %v1240 = vsel %vm1222, %v1238, %v1239
        %v1241 = vrot.slane %v1210, 1
        %v1242 = vrot.slane %v903, 1
        %v1243 = vsel %vm1222, %v1241, %v1242
        %v1244 = vrot.slane %v1211, 1
        %v1245 = vrot.slane %v904, 1
        %v1246 = vsel %vm1222, %v1244, %v1245
        %v1247 = vrot.slane %v1212, 1
        %v1248 = vrot.slane %v905, 1
        %v1249 = vsel %vm1222, %v1247, %v1248
        %v1250 = vrot.slane %v1213, 1
        %v1251 = vrot.slane %v906, 1
        %v1252 = vsel %vm1222, %v1250, %v1251
        %v1253 = vrot.slane %v1214, 1
        %v1254 = vrot.slane %v907, 1
        %v1255 = vsel %vm1222, %v1253, %v1254
        %v1256 = vrot.slane %v1215, 1
        %v1257 = vrot.slane %v908, 1
        %v1258 = vsel %vm1222, %v1256, %v1257
        %v1259 = vrot.slane %v1216, 1
        %v1260 = vrot.slane %v909, 1
        %v1261 = vsel %vm1222, %v1259, %v1260
        %v1262 = vrot.slane %v1217, 1
        %v1263 = vrot.slane %v910, 1
        %v1264 = vsel %vm1222, %v1262, %v1263
        %v1265 = vrot.slane %v1218, 1
        %v1266 = vrot.slane %v911, 1
        %v1267 = vsel %vm1222, %v1265, %v1266
        %v1268 = vrot.slane %v1219, 1
        %v1269 = vrot.slane %v912, 1
        %v1270 = vsel %vm1222, %v1268, %v1269
        %v1271 = vrot.slane %v1220, 1
        %v1272 = vrot.slane %v913, 1
        %v1273 = vsel %vm1222, %v1271, %v1272
        %v1274 = vrot.slane %v1221, 1
        %v1275 = vrot.slane %v914, 1
        %v1276 = vsel %vm1222, %v1274, %v1275
        %1277 = vrot.lane.b32.xlu0 %v1225, 6
        %v1278 = vpop.permute.xlu0 %1277
        %1279 = vrot.lane.b32.xlu0 %v1228, 6
        %v1280 = vpop.permute.xlu0 %1279
        %1281 = vrot.lane.b32.xlu0 %v1231, 6
        %v1282 = vpop.permute.xlu0 %1281
        %1283 = vrot.lane.b32.xlu0 %v1234, 6
        %v1284 = vpop.permute.xlu0 %1283
        %1285 = vrot.lane.b32.xlu0 %v1237, 6
        %v1286 = vpop.permute.xlu0 %1285
        %1287 = vrot.lane.b32.xlu0 %v1240, 6
        %v1288 = vpop.permute.xlu0 %1287
        %1289 = vrot.lane.b32.xlu0 %v1243, 6
        %v1290 = vpop.permute.xlu0 %1289
        %1291 = vrot.lane.b32.xlu0 %v1246, 6
        %v1292 = vpop.permute.xlu0 %1291
        %1293 = vrot.lane.b32.xlu0 %v1249, 6
        %v1294 = vpop.permute.xlu0 %1293
        %1295 = vrot.lane.b32.xlu0 %v1252, 6
        %v1296 = vpop.permute.xlu0 %1295
        %1297 = vrot.lane.b32.xlu0 %v1255, 6
        %v1298 = vpop.permute.xlu0 %1297
        %1299 = vrot.lane.b32.xlu0 %v1258, 6
        %v1300 = vpop.permute.xlu0 %1299
        %1301 = vrot.lane.b32.xlu0 %v1261, 6
        %v1302 = vpop.permute.xlu0 %1301
        %1303 = vrot.lane.b32.xlu0 %v1264, 6
        %v1304 = vpop.permute.xlu0 %1303
        %1305 = vrot.lane.b32.xlu0 %v1267, 6
        %v1306 = vpop.permute.xlu0 %1305
        %1307 = vrot.lane.b32.xlu0 %v1270, 6
        %v1308 = vpop.permute.xlu0 %1307
        %1309 = vrot.lane.b32.xlu0 %v1273, 6
        %v1310 = vpop.permute.xlu0 %1309
        %1311 = vrot.lane.b32.xlu0 %v1276, 6
        %v1312 = vpop.permute.xlu0 %1311
        %vm1313 = vcmask 23552
        %v1315 = vsel %vm1313, %v843, %v1133
        %v1317 = vsel %vm1313, %v844, %v1135
        %v1319 = vsel %vm1313, %v845, %v1137
        %v1321 = vsel %vm1313, %v846, %v1139
        %v1323 = vsel %vm1313, %v847, %v1141
        %v1325 = vsel %vm1313, %v848, %v1143
        %v1327 = vsel %vm1313, %v849, %v1145
        %v1329 = vsel %vm1313, %v850, %v1147
        %v1331 = vsel %vm1313, %v851, %v1149
        %v1333 = vsel %vm1313, %v852, %v1151
        %v1335 = vsel %vm1313, %v853, %v1153
        %v1337 = vsel %vm1313, %v854, %v1155
        %v1339 = vsel %vm1313, %v855, %v1157
        %v1341 = vsel %vm1313, %v856, %v1159
        %v1343 = vsel %vm1313, %v857, %v1161
        %v1345 = vsel %vm1313, %v858, %v1163
        %v1347 = vsel %vm1313, %v859, %v1165
        %v1349 = vsel %vm1313, %v860, %v1167
        %vm1350 = vcmask 48128
        %v1352 = vsel %vm1350, %v1315, %v1278
        %v1354 = vsel %vm1350, %v1317, %v1280
        %v1356 = vsel %vm1350, %v1319, %v1282
        %v1358 = vsel %vm1350, %v1321, %v1284
        %v1360 = vsel %vm1350, %v1323, %v1286
        %v1362 = vsel %vm1350, %v1325, %v1288
        %v1364 = vsel %vm1350, %v1327, %v1290
        %v1366 = vsel %vm1350, %v1329, %v1292
        %v1368 = vsel %vm1350, %v1331, %v1294
        %v1370 = vsel %vm1350, %v1333, %v1296
        %v1372 = vsel %vm1350, %v1335, %v1298
        %v1374 = vsel %vm1350, %v1337, %v1300
        %v1376 = vsel %vm1350, %v1339, %v1302
        %v1378 = vsel %vm1350, %v1341, %v1304
        %v1380 = vsel %vm1350, %v1343, %v1306
        %v1382 = vsel %vm1350, %v1345, %v1308
        %v1384 = vsel %vm1350, %v1347, %v1310
        %v1386 = vsel %vm1350, %v1349, %v1312
        %v1387 = vld [vmem:[%s2] sm:$0x1]
        %v1389 = vlaneseq
        %v1390 = vshrl.u32 %v1389, 7
        %v1391 = vsub.s32 0, %v1390
        %v1392 = vrot.slane %v1387, %v1391
        %vm1394 = vcmask 523264
        %1395 = vst.msk [vmem:[#allocation3] sm:$0xff] %vm1394, %v1392
        %1396 = vst.msk [vmem:[#allocation3 + $0x8] sm:$0xff] %vm1394, %v1392
        %1397 = vst.msk [vmem:[#allocation3 + $0x10] sm:$0xff] %vm1394, %v1392
        %1398 = vst.msk [vmem:[#allocation3 + $0x18] sm:$0xff] %vm1394, %v1392
        %1399 = vst.msk [vmem:[#allocation3 + $0x20] sm:$0xff] %vm1394, %v1392
        %1400 = vst.msk [vmem:[#allocation3 + $0x28] sm:$0xff] %vm1394, %v1392
        %1401 = vst.msk [vmem:[#allocation3 + $0x30] sm:$0xff] %vm1394, %v1392
        %1402 = vst.msk [vmem:[#allocation3 + $0x38] sm:$0xff] %vm1394, %v1392
        %1403 = vst.msk [vmem:[#allocation3 + $0x40] sm:$0xff] %vm1394, %v1392
        %1404 = vst.msk [vmem:[#allocation3 + $0x48] sm:$0xff] %vm1394, %v1392
        %1405 = vst.msk [vmem:[#allocation3 + $0x50] sm:$0xff] %vm1394, %v1392
        %1406 = vst.msk [vmem:[#allocation3 + $0x58] sm:$0xff] %vm1394, %v1392
        %1407 = vst.msk [vmem:[#allocation3 + $0x60] sm:$0xff] %vm1394, %v1392
        %1408 = vst.msk [vmem:[#allocation3 + $0x68] sm:$0xff] %vm1394, %v1392
        %1409 = vst.msk [vmem:[#allocation3 + $0x70] sm:$0xff] %vm1394, %v1392
        %1410 = vst.msk [vmem:[#allocation3 + $0x78] sm:$0xff] %vm1394, %v1392
        %1411 = vst.msk [vmem:[#allocation3 + $0x80] sm:$0xff] %vm1394, %v1392
        %1412 = vst.msk [vmem:[#allocation3 + $0x88] sm:$0xff] %vm1394, %v1392
        %1413 = vst.msk [vmem:[#allocation3 + $0x90] sm:$0xff] %vm1394, %v1392
        %1414 = vst.msk [vmem:[#allocation3 + $0x98] sm:$0xff] %vm1394, %v1392
        %1415 = vst.msk [vmem:[#allocation3 + $0xa0] sm:$0xff] %vm1394, %v1392
        %1416 = vst.msk [vmem:[#allocation3 + $0xa8] sm:$0xff] %vm1394, %v1392
        %1417 = vst.msk [vmem:[#allocation3 + $0xb0] sm:$0xff] %vm1394, %v1392
        %1418 = vst.msk [vmem:[#allocation3 + $0xb8] sm:$0xff] %vm1394, %v1392
        %1419 = vst.msk [vmem:[#allocation3 + $0xc0] sm:$0xff] %vm1394, %v1392
        %1420 = vst.msk [vmem:[#allocation3 + $0xc8] sm:$0xff] %vm1394, %v1392
        %1421 = vst.msk [vmem:[#allocation3 + $0xd0] sm:$0xff] %vm1394, %v1392
        %1422 = vst.msk [vmem:[#allocation3 + $0xd8] sm:$0xff] %vm1394, %v1392
        %1423 = vst.msk [vmem:[#allocation3 + $0xe0] sm:$0xff] %vm1394, %v1392
        %1424 = vst.msk [vmem:[#allocation3 + $0xe8] sm:$0xff] %vm1394, %v1392
        %1425 = vst.msk [vmem:[#allocation3 + $0xf0] sm:$0xff] %vm1394, %v1392
        %1426 = vst.msk [vmem:[#allocation3 + $0xf8] sm:$0xff] %vm1394, %v1392
        %1443 = vrot.lane.b32.xlu0 %v1354, 9
        %v1444 = vpop.permute.xlu0 %1443
        %1445 = vrot.lane.b32.xlu0 %v1356, 9
        %v1446 = vpop.permute.xlu0 %1445
        %1447 = vrot.lane.b32.xlu0 %v1358, 9
        %v1448 = vpop.permute.xlu0 %1447
        %1449 = vrot.lane.b32.xlu0 %v1360, 9
        %v1450 = vpop.permute.xlu0 %1449
        %1451 = vrot.lane.b32.xlu0 %v1362, 9
        %v1452 = vpop.permute.xlu0 %1451
        %1453 = vrot.lane.b32.xlu0 %v1364, 9
        %v1454 = vpop.permute.xlu0 %1453
        %1455 = vrot.lane.b32.xlu0 %v1366, 9
        %v1456 = vpop.permute.xlu0 %1455
        %1457 = vrot.lane.b32.xlu0 %v1368, 9
        %v1458 = vpop.permute.xlu0 %1457
        %1459 = vrot.lane.b32.xlu0 %v1370, 9
        %v1460 = vpop.permute.xlu0 %1459
        %1461 = vrot.lane.b32.xlu0 %v1372, 9
        %v1462 = vpop.permute.xlu0 %1461
        %1463 = vrot.lane.b32.xlu0 %v1374, 9
        %v1464 = vpop.permute.xlu0 %1463
        %1465 = vrot.lane.b32.xlu0 %v1376, 9
        %v1466 = vpop.permute.xlu0 %1465
        %1467 = vrot.lane.b32.xlu0 %v1378, 9
        %v1468 = vpop.permute.xlu0 %1467
        %1469 = vrot.lane.b32.xlu0 %v1380, 9
        %v1470 = vpop.permute.xlu0 %1469
        %1471 = vrot.lane.b32.xlu0 %v1382, 9
        %v1472 = vpop.permute.xlu0 %1471
        %1473 = vrot.lane.b32.xlu0 %v1384, 9
        %v1474 = vpop.permute.xlu0 %1473
        %1476 = vrot.lane.b32.xlu0 %v1356, 18
        %v1477 = vpop.permute.xlu0 %1476
        %1478 = vrot.lane.b32.xlu0 %v1358, 18
        %v1479 = vpop.permute.xlu0 %1478
        %1480 = vrot.lane.b32.xlu0 %v1360, 18
        %v1481 = vpop.permute.xlu0 %1480
        %1482 = vrot.lane.b32.xlu0 %v1362, 18
        %v1483 = vpop.permute.xlu0 %1482
        %1484 = vrot.lane.b32.xlu0 %v1364, 18
        %v1485 = vpop.permute.xlu0 %1484
        %1486 = vrot.lane.b32.xlu0 %v1366, 18
        %v1487 = vpop.permute.xlu0 %1486
        %1488 = vrot.lane.b32.xlu0 %v1368, 18
        %v1489 = vpop.permute.xlu0 %1488
        %1490 = vrot.lane.b32.xlu0 %v1370, 18
        %v1491 = vpop.permute.xlu0 %1490
        %1492 = vrot.lane.b32.xlu0 %v1372, 18
        %v1493 = vpop.permute.xlu0 %1492
        %1494 = vrot.lane.b32.xlu0 %v1374, 18
        %v1495 = vpop.permute.xlu0 %1494
        %1496 = vrot.lane.b32.xlu0 %v1376, 18
        %v1497 = vpop.permute.xlu0 %1496
        %1498 = vrot.lane.b32.xlu0 %v1378, 18
        %v1499 = vpop.permute.xlu0 %1498
        %1500 = vrot.lane.b32.xlu0 %v1380, 18
        %v1501 = vpop.permute.xlu0 %1500
        %1502 = vrot.lane.b32.xlu0 %v1382, 18
        %v1503 = vpop.permute.xlu0 %1502
        %1504 = vrot.lane.b32.xlu0 %v1384, 18
        %v1505 = vpop.permute.xlu0 %1504
        %1506 = vrot.lane.b32.xlu0 %v1386, 18
        %v1507 = vpop.permute.xlu0 %1506
        %vm1508 = vcmask 72704
        %v1510 = vsel %vm1508, %v1352, %v1444
        %v1512 = vsel %vm1508, %v1354, %v1446
        %v1514 = vsel %vm1508, %v1356, %v1448
        %v1516 = vsel %vm1508, %v1358, %v1450
        %v1518 = vsel %vm1508, %v1360, %v1452
        %v1520 = vsel %vm1508, %v1362, %v1454
        %v1522 = vsel %vm1508, %v1364, %v1456
        %v1524 = vsel %vm1508, %v1366, %v1458
        %v1526 = vsel %vm1508, %v1368, %v1460
        %v1528 = vsel %vm1508, %v1370, %v1462
        %v1530 = vsel %vm1508, %v1372, %v1464
        %v1532 = vsel %vm1508, %v1374, %v1466
        %v1534 = vsel %vm1508, %v1376, %v1468
        %v1536 = vsel %vm1508, %v1378, %v1470
        %v1538 = vsel %vm1508, %v1380, %v1472
        %v1540 = vsel %vm1508, %v1382, %v1474
        %vm1541 = vcmask 146432
        %v1543 = vsel %vm1541, %v1510, %v1477
        %v1545 = vsel %vm1541, %v1512, %v1479
        %v1547 = vsel %vm1541, %v1514, %v1481
        %v1549 = vsel %vm1541, %v1516, %v1483
        %v1551 = vsel %vm1541, %v1518, %v1485
        %v1553 = vsel %vm1541, %v1520, %v1487
        %v1555 = vsel %vm1541, %v1522, %v1489
        %v1557 = vsel %vm1541, %v1524, %v1491
        %v1559 = vsel %vm1541, %v1526, %v1493
        %v1561 = vsel %vm1541, %v1528, %v1495
        %v1563 = vsel %vm1541, %v1530, %v1497
        %v1565 = vsel %vm1541, %v1532, %v1499
        %v1567 = vsel %vm1541, %v1534, %v1501
        %v1569 = vsel %vm1541, %v1536, %v1503
        %v1571 = vsel %vm1541, %v1538, %v1505
        %v1573 = vsel %vm1541, %v1540, %v1507
        %v1574 = vld [vmem:[#allocation3] sm:$0xff]
        %v1575 = vld [vmem:[#allocation3 + $0x8] sm:$0xff]
        %v1576 = vld [vmem:[#allocation3 + $0x10] sm:$0xff]
        %v1577 = vld [vmem:[#allocation3 + $0x18] sm:$0xff]
        %v1578 = vld [vmem:[#allocation3 + $0x20] sm:$0xff]
        %v1579 = vld [vmem:[#allocation3 + $0x28] sm:$0xff]
        %v1580 = vld [vmem:[#allocation3 + $0x30] sm:$0xff]
        %v1581 = vld [vmem:[#allocation3 + $0x38] sm:$0xff]
        %v1582 = vld [vmem:[#allocation3 + $0x40] sm:$0xff]
        %v1583 = vld [vmem:[#allocation3 + $0x48] sm:$0xff]
        %v1584 = vld [vmem:[#allocation3 + $0x50] sm:$0xff]
        %v1585 = vld [vmem:[#allocation3 + $0x58] sm:$0xff]
        %v1586 = vld [vmem:[#allocation3 + $0x60] sm:$0xff]
        %v1587 = vld [vmem:[#allocation3 + $0x68] sm:$0xff]
        %v1588 = vld [vmem:[#allocation3 + $0x70] sm:$0xff]
        %v1589 = vld [vmem:[#allocation3 + $0x78] sm:$0xff]
        %v1590 = vld [vmem:[#allocation3 + $0x80] sm:$0xff]
        %v1591 = vld [vmem:[#allocation3 + $0x88] sm:$0xff]
        %v1592 = vld [vmem:[#allocation3 + $0x90] sm:$0xff]
        %v1593 = vld [vmem:[#allocation3 + $0x98] sm:$0xff]
        %v1594 = vld [vmem:[#allocation3 + $0xa0] sm:$0xff]
        %v1595 = vld [vmem:[#allocation3 + $0xa8] sm:$0xff]
        %v1596 = vld [vmem:[#allocation3 + $0xb0] sm:$0xff]
        %v1597 = vld [vmem:[#allocation3 + $0xb8] sm:$0xff]
        %v1598 = vld [vmem:[#allocation3 + $0xc0] sm:$0xff]
        %v1599 = vld [vmem:[#allocation3 + $0xc8] sm:$0xff]
        %v1600 = vld [vmem:[#allocation3 + $0xd0] sm:$0xff]
        %v1601 = vld [vmem:[#allocation3 + $0xd8] sm:$0xff]
        %v1602 = vld [vmem:[#allocation3 + $0xe0] sm:$0xff]
        %v1603 = vld [vmem:[#allocation3 + $0xe8] sm:$0xff]
        %v1604 = vld [vmem:[#allocation3 + $0xf0] sm:$0xff]
        %v1605 = vld [vmem:[#allocation3 + $0xf8] sm:$0xff]
        %v1606 = vld [vmem:[%s1] sm:$0xf]
        %v1607 = vld [vmem:[%s1 + $0x4] sm:$0xf]
        %v1608 = vld [vmem:[%s1 + $0x8] sm:$0xf]
        %v1609 = vld [vmem:[%s1 + $0xc] sm:$0x3]
        %v1614 = vunpack.c.l.b16 %v1606
        %v1615 = vunpack.c.l.b16 %v1607
        %v1616 = vunpack.c.l.b16 %v1608
        %v1617 = vunpack.c.l.b16 %v1609
        %v1618 = vpack.c.b16 %v1615, %v1614
        %v1619 = vpack.c.b16 %v1617, %v1616
        %vm1621 = vcmask 220160
        %v1622 = vsel %vm1621, %v1543, 0
        %v1624 = vsel %vm1621, %v1545, 0
        %v1626 = vsel %vm1621, %v1547, 0
        %v1628 = vsel %vm1621, %v1549, 0
        %v1630 = vsel %vm1621, %v1551, 0
        %v1632 = vsel %vm1621, %v1553, 0
        %v1634 = vsel %vm1621, %v1555, 0
        %v1636 = vsel %vm1621, %v1557, 0
        %v1638 = vsel %vm1621, %v1559, 0
        %v1640 = vsel %vm1621, %v1561, 0
        %v1642 = vsel %vm1621, %v1563, 0
        %v1644 = vsel %vm1621, %v1565, 0
        %v1646 = vsel %vm1621, %v1567, 0
        %v1648 = vsel %vm1621, %v1569, 0
        %v1650 = vsel %vm1621, %v1571, 0
        %v1652 = vsel %vm1621, %v1573, 0
        %vm1654 = vcmask 1044480
        %vm1655 = vcmask 1045504
        %v1656 = vsel %vm1654, 4294967295, 65535
        %v1657 = vsel %vm1655, %v1656, 0
        %v1659 = vand.u32 %v1619, %v1657
        %1661 = vmatprep.subr.bf16.mxu0 0
        %1662 = vmatpush1.bf16.msra.mxu0 0
        %1663 = vmatprep.subr.bf16.mxu0 0
        %1664 = vmatpush1.bf16.msra.mxu0 0
        %1665 = vmatprep.subr.bf16.mxu0 0
        %1666 = vmatpush1.bf16.msra.mxu0 0
        %1667 = vmatprep.subr.bf16.mxu0 0
        %1668 = vmatpush1.bf16.msra.mxu0 0
        %1669 = vmatprep.subr.bf16.mxu0 0
        %1670 = vmatpush1.bf16.msra.mxu0 0
        %1671 = vmatprep.subr.bf16.mxu0 0
        %1672 = vmatpush1.bf16.msra.mxu0 0
        %1673 = vmatprep.subr.bf16.mxu0 0
        %1674 = vmatpush1.bf16.msra.mxu0 %v1659
        %1675 = vmatprep.subr.bf16.mxu0 0
        %1676 = vmatpush1.bf16.msra.mxu0 %v1618
        %1677 = vmatprep.subr.bf16.mxu0 0
        %1678 = vmatpush2.bf16.msra.mxu0 0
        %1679 = vmatprep.subr.bf16.mxu0 0
        %1680 = vmatpush2.bf16.msra.mxu0 0
        %1681 = vmatprep.subr.bf16.mxu0 0
        %1682 = vmatpush2.bf16.msra.mxu0 0
        %1683 = vmatprep.subr.bf16.mxu0 0
        %1684 = vmatpush2.bf16.msra.mxu0 0
        %1685 = vmatprep.subr.bf16.mxu0 0
        %1686 = vmatpush2.bf16.msra.mxu0 0
        %1687 = vmatprep.subr.bf16.mxu0 0
        %1688 = vmatpush2.bf16.msra.mxu0 0
        %1689 = vmatprep.subr.bf16.mxu0 0
        %1690 = vmatpush2.bf16.msra.mxu0 0
        %1691 = vmatprep.subr.bf16.mxu0 0
        %1692 = vmatpush2.bf16.msra.mxu0 0
        %1693 = vmatprep.mubr.bf16.mxu0 0
        %1694 = vmatmul.mubr.bf16.gmra.mxu0 %v1622
        %v1695 = vpop.f32.mrf.mxu0
        %v1696 = vadd.f32 0.0, %v1695
        %v1697 = vpop.f32.mrf.mxu0
        %v1698 = vpop.f32.mrf.mxu0
        %v1699 = vadd.f32 0.0, %v1698
        %v1700 = vpop.f32.mrf.mxu0
        %1701 = vmatprep.mubr.bf16.mxu0 0
        %1702 = vmatmul.mubr.bf16.gmra.mxu0 %v1624
        %v1703 = vpop.f32.mrf.mxu0
        %v1704 = vadd.f32 0.0, %v1703
        %v1705 = vpop.f32.mrf.mxu0
        %v1706 = vpop.f32.mrf.mxu0
        %v1707 = vadd.f32 0.0, %v1706
        %v1708 = vpop.f32.mrf.mxu0
        %1709 = vmatprep.mubr.bf16.mxu0 0
        %1710 = vmatmul.mubr.bf16.gmra.mxu0 %v1626
        %v1711 = vpop.f32.mrf.mxu0
        %v1712 = vadd.f32 0.0, %v1711
        %v1713 = vpop.f32.mrf.mxu0
        %v1714 = vpop.f32.mrf.mxu0
        %v1715 = vadd.f32 0.0, %v1714
        %v1716 = vpop.f32.mrf.mxu0
        %1717 = vmatprep.mubr.bf16.mxu0 0
        %1718 = vmatmul.mubr.bf16.gmra.mxu0 %v1628
        %v1719 = vpop.f32.mrf.mxu0
        %v1720 = vadd.f32 0.0, %v1719
        %v1721 = vpop.f32.mrf.mxu0
        %v1722 = vpop.f32.mrf.mxu0
        %v1723 = vadd.f32 0.0, %v1722
        %v1724 = vpop.f32.mrf.mxu0
        %1725 = vmatprep.mubr.bf16.mxu0 0
        %1726 = vmatmul.mubr.bf16.gmra.mxu0 %v1630
        %v1727 = vpop.f32.mrf.mxu0
        %v1728 = vadd.f32 0.0, %v1727
        %v1729 = vpop.f32.mrf.mxu0
        %v1730 = vpop.f32.mrf.mxu0
        %v1731 = vadd.f32 0.0, %v1730
        %v1732 = vpop.f32.mrf.mxu0
        %1733 = vmatprep.mubr.bf16.mxu0 0
        %1734 = vmatmul.mubr.bf16.gmra.mxu0 %v1632
        %v1735 = vpop.f32.mrf.mxu0
        %v1736 = vadd.f32 0.0, %v1735
        %v1737 = vpop.f32.mrf.mxu0
        %v1738 = vpop.f32.mrf.mxu0
        %v1739 = vadd.f32 0.0, %v1738
        %v1740 = vpop.f32.mrf.mxu0
        %1741 = vmatprep.mubr.bf16.mxu0 0
        %1742 = vmatmul.mubr.bf16.gmra.mxu0 %v1634
        %v1743 = vpop.f32.mrf.mxu0
        %v1744 = vadd.f32 0.0, %v1743
        %v1745 = vpop.f32.mrf.mxu0
        %v1746 = vpop.f32.mrf.mxu0
        %v1747 = vadd.f32 0.0, %v1746
        %v1748 = vpop.f32.mrf.mxu0
        %1749 = vmatprep.mubr.bf16.mxu0 0
        %1750 = vmatmul.mubr.bf16.gmra.mxu0 %v1636
        %v1751 = vpop.f32.mrf.mxu0
        %v1752 = vadd.f32 0.0, %v1751
        %v1753 = vpop.f32.mrf.mxu0
        %v1754 = vpop.f32.mrf.mxu0
        %v1755 = vadd.f32 0.0, %v1754
        %v1756 = vpop.f32.mrf.mxu0
        %1757 = vmatprep.mubr.bf16.mxu0 0
        %1758 = vmatmul.mubr.bf16.gmra.mxu0 %v1638
        %v1759 = vpop.f32.mrf.mxu0
        %v1760 = vadd.f32 0.0, %v1759
        %v1761 = vpop.f32.mrf.mxu0
        %v1762 = vpop.f32.mrf.mxu0
        %v1763 = vadd.f32 0.0, %v1762
        %v1764 = vpop.f32.mrf.mxu0
        %1765 = vmatprep.mubr.bf16.mxu0 0
        %1766 = vmatmul.mubr.bf16.gmra.mxu0 %v1640
        %v1767 = vpop.f32.mrf.mxu0
        %v1768 = vadd.f32 0.0, %v1767
        %v1769 = vpop.f32.mrf.mxu0
        %v1770 = vpop.f32.mrf.mxu0
        %v1771 = vadd.f32 0.0, %v1770
        %v1772 = vpop.f32.mrf.mxu0
        %1773 = vmatprep.mubr.bf16.mxu0 0
        %1774 = vmatmul.mubr.bf16.gmra.mxu0 %v1642
        %v1775 = vpop.f32.mrf.mxu0
        %v1776 = vadd.f32 0.0, %v1775
        %v1777 = vpop.f32.mrf.mxu0
        %v1778 = vpop.f32.mrf.mxu0
        %v1779 = vadd.f32 0.0, %v1778
        %v1780 = vpop.f32.mrf.mxu0
        %1781 = vmatprep.mubr.bf16.mxu0 0
        %1782 = vmatmul.mubr.bf16.gmra.mxu0 %v1644
        %v1783 = vpop.f32.mrf.mxu0
        %v1784 = vadd.f32 0.0, %v1783
        %v1785 = vpop.f32.mrf.mxu0
        %v1786 = vpop.f32.mrf.mxu0
        %v1787 = vadd.f32 0.0, %v1786
        %v1788 = vpop.f32.mrf.mxu0
        %1789 = vmatprep.mubr.bf16.mxu0 0
        %1790 = vmatmul.mubr.bf16.gmra.mxu0 %v1646
        %v1791 = vpop.f32.mrf.mxu0
        %v1792 = vadd.f32 0.0, %v1791
        %v1793 = vpop.f32.mrf.mxu0
        %v1794 = vpop.f32.mrf.mxu0
        %v1795 = vadd.f32 0.0, %v1794
        %v1796 = vpop.f32.mrf.mxu0
        %1797 = vmatprep.mubr.bf16.mxu0 0
        %1798 = vmatmul.mubr.bf16.gmra.mxu0 %v1648
        %v1799 = vpop.f32.mrf.mxu0
        %v1800 = vadd.f32 0.0, %v1799
        %v1801 = vpop.f32.mrf.mxu0
        %v1802 = vpop.f32.mrf.mxu0
        %v1803 = vadd.f32 0.0, %v1802
        %v1804 = vpop.f32.mrf.mxu0
        %1805 = vmatprep.mubr.bf16.mxu0 0
        %1806 = vmatmul.mubr.bf16.gmra.mxu0 %v1650
        %v1807 = vpop.f32.mrf.mxu0
        %v1808 = vadd.f32 0.0, %v1807
        %v1809 = vpop.f32.mrf.mxu0
        %v1810 = vpop.f32.mrf.mxu0
        %v1811 = vadd.f32 0.0, %v1810
        %v1812 = vpop.f32.mrf.mxu0
        %1813 = vmatprep.mubr.bf16.mxu0 0
        %1814 = vmatmul.mubr.bf16.gmra.mxu0 %v1652
        %v1815 = vpop.f32.mrf.mxu0
        %v1816 = vadd.f32 0.0, %v1815
        %v1817 = vpop.f32.mrf.mxu0
        %v1818 = vpop.f32.mrf.mxu0
        %v1819 = vadd.f32 0.0, %v1818
        %v1820 = vpop.f32.mrf.mxu0
        %1821 = vdwg.mxu0
        %v1822 = vadd.f32 %v1574, %v1696
        %v1823 = vadd.f32 %v1575, %v1699
        %v1824 = vadd.f32 %v1576, %v1704
        %v1825 = vadd.f32 %v1577, %v1707
        %v1826 = vadd.f32 %v1578, %v1712
        %v1827 = vadd.f32 %v1579, %v1715
        %v1828 = vadd.f32 %v1580, %v1720
        %v1829 = vadd.f32 %v1581, %v1723
        %v1830 = vadd.f32 %v1582, %v1728
        %v1831 = vadd.f32 %v1583, %v1731
        %v1832 = vadd.f32 %v1584, %v1736
        %v1833 = vadd.f32 %v1585, %v1739
        %v1834 = vadd.f32 %v1586, %v1744
        %v1835 = vadd.f32 %v1587, %v1747
        %v1836 = vadd.f32 %v1588, %v1752
        %v1837 = vadd.f32 %v1589, %v1755
        %v1838 = vadd.f32 %v1590, %v1760
        %v1839 = vadd.f32 %v1591, %v1763
        %v1840 = vadd.f32 %v1592, %v1768
        %v1841 = vadd.f32 %v1593, %v1771
        %v1842 = vadd.f32 %v1594, %v1776
        %v1843 = vadd.f32 %v1595, %v1779
        %v1844 = vadd.f32 %v1596, %v1784
        %v1845 = vadd.f32 %v1597, %v1787
        %v1846 = vadd.f32 %v1598, %v1792
        %v1847 = vadd.f32 %v1599, %v1795
        %v1848 = vadd.f32 %v1600, %v1800
        %v1849 = vadd.f32 %v1601, %v1803
        %v1850 = vadd.f32 %v1602, %v1808
        %v1851 = vadd.f32 %v1603, %v1811
        %v1852 = vadd.f32 %v1604, %v1816
        %v1853 = vadd.f32 %v1605, %v1819
        %1854 = vst.msk [vmem:[#allocation3] sm:$0xff] %vm1394, %v1822
        %1855 = vst.msk [vmem:[#allocation3 + $0x8] sm:$0xff] %vm1394, %v1823
        %1856 = vst.msk [vmem:[#allocation3 + $0x10] sm:$0xff] %vm1394, %v1824
        %1857 = vst.msk [vmem:[#allocation3 + $0x18] sm:$0xff] %vm1394, %v1825
        %1858 = vst.msk [vmem:[#allocation3 + $0x20] sm:$0xff] %vm1394, %v1826
        %1859 = vst.msk [vmem:[#allocation3 + $0x28] sm:$0xff] %vm1394, %v1827
        %1860 = vst.msk [vmem:[#allocation3 + $0x30] sm:$0xff] %vm1394, %v1828
        %1861 = vst.msk [vmem:[#allocation3 + $0x38] sm:$0xff] %vm1394, %v1829
        %1862 = vst.msk [vmem:[#allocation3 + $0x40] sm:$0xff] %vm1394, %v1830
        %1863 = vst.msk [vmem:[#allocation3 + $0x48] sm:$0xff] %vm1394, %v1831
        %1864 = vst.msk [vmem:[#allocation3 + $0x50] sm:$0xff] %vm1394, %v1832
        %1865 = vst.msk [vmem:[#allocation3 + $0x58] sm:$0xff] %vm1394, %v1833
        %1866 = vst.msk [vmem:[#allocation3 + $0x60] sm:$0xff] %vm1394, %v1834
        %1867 = vst.msk [vmem:[#allocation3 + $0x68] sm:$0xff] %vm1394, %v1835
        %1868 = vst.msk [vmem:[#allocation3 + $0x70] sm:$0xff] %vm1394, %v1836
        %1869 = vst.msk [vmem:[#allocation3 + $0x78] sm:$0xff] %vm1394, %v1837
        %1870 = vst.msk [vmem:[#allocation3 + $0x80] sm:$0xff] %vm1394, %v1838
        %1871 = vst.msk [vmem:[#allocation3 + $0x88] sm:$0xff] %vm1394, %v1839
        %1872 = vst.msk [vmem:[#allocation3 + $0x90] sm:$0xff] %vm1394, %v1840
        %1873 = vst.msk [vmem:[#allocation3 + $0x98] sm:$0xff] %vm1394, %v1841
        %1874 = vst.msk [vmem:[#allocation3 + $0xa0] sm:$0xff] %vm1394, %v1842
        %1875 = vst.msk [vmem:[#allocation3 + $0xa8] sm:$0xff] %vm1394, %v1843
        %1876 = vst.msk [vmem:[#allocation3 + $0xb0] sm:$0xff] %vm1394, %v1844
        %1877 = vst.msk [vmem:[#allocation3 + $0xb8] sm:$0xff] %vm1394, %v1845
        %1878 = vst.msk [vmem:[#allocation3 + $0xc0] sm:$0xff] %vm1394, %v1846
        %1879 = vst.msk [vmem:[#allocation3 + $0xc8] sm:$0xff] %vm1394, %v1847
        %1880 = vst.msk [vmem:[#allocation3 + $0xd0] sm:$0xff] %vm1394, %v1848
        %1881 = vst.msk [vmem:[#allocation3 + $0xd8] sm:$0xff] %vm1394, %v1849
        %1882 = vst.msk [vmem:[#allocation3 + $0xe0] sm:$0xff] %vm1394, %v1850
        %1883 = vst.msk [vmem:[#allocation3 + $0xe8] sm:$0xff] %vm1394, %v1851
        %1884 = vst.msk [vmem:[#allocation3 + $0xf0] sm:$0xff] %vm1394, %v1852
        %1885 = vst.msk [vmem:[#allocation3 + $0xf8] sm:$0xff] %vm1394, %v1853
        %v1886 = vld [vmem:[#allocation3] sm:$0xff]
        %v1887 = vld [vmem:[#allocation3 + $0x8] sm:$0xff]
        %v1888 = vld [vmem:[#allocation3 + $0x10] sm:$0xff]
        %v1889 = vld [vmem:[#allocation3 + $0x18] sm:$0xff]
        %v1890 = vld [vmem:[#allocation3 + $0x20] sm:$0xff]
        %v1891 = vld [vmem:[#allocation3 + $0x28] sm:$0xff]
        %v1892 = vld [vmem:[#allocation3 + $0x30] sm:$0xff]
        %v1893 = vld [vmem:[#allocation3 + $0x38] sm:$0xff]
        %v1894 = vld [vmem:[#allocation3 + $0x40] sm:$0xff]
        %v1895 = vld [vmem:[#allocation3 + $0x48] sm:$0xff]
        %v1896 = vld [vmem:[#allocation3 + $0x50] sm:$0xff]
        %v1897 = vld [vmem:[#allocation3 + $0x58] sm:$0xff]
        %v1898 = vld [vmem:[#allocation3 + $0x60] sm:$0xff]
        %v1899 = vld [vmem:[#allocation3 + $0x68] sm:$0xff]
        %v1900 = vld [vmem:[#allocation3 + $0x70] sm:$0xff]
        %v1901 = vld [vmem:[#allocation3 + $0x78] sm:$0xff]
        %v1902 = vld [vmem:[#allocation3 + $0x80] sm:$0xff]
        %v1903 = vld [vmem:[#allocation3 + $0x88] sm:$0xff]
        %v1904 = vld [vmem:[#allocation3 + $0x90] sm:$0xff]
        %v1905 = vld [vmem:[#allocation3 + $0x98] sm:$0xff]
        %v1906 = vld [vmem:[#allocation3 + $0xa0] sm:$0xff]
        %v1907 = vld [vmem:[#allocation3 + $0xa8] sm:$0xff]
        %v1908 = vld [vmem:[#allocation3 + $0xb0] sm:$0xff]
        %v1909 = vld [vmem:[#allocation3 + $0xb8] sm:$0xff]
        %v1910 = vld [vmem:[#allocation3 + $0xc0] sm:$0xff]
        %v1911 = vld [vmem:[#allocation3 + $0xc8] sm:$0xff]
        %v1912 = vld [vmem:[#allocation3 + $0xd0] sm:$0xff]
        %v1913 = vld [vmem:[#allocation3 + $0xd8] sm:$0xff]
        %v1914 = vld [vmem:[#allocation3 + $0xe0] sm:$0xff]
        %v1915 = vld [vmem:[#allocation3 + $0xe8] sm:$0xff]
        %v1916 = vld [vmem:[#allocation3 + $0xf0] sm:$0xff]
        %v1917 = vld [vmem:[#allocation3 + $0xf8] sm:$0xff]
        %v1918 = vmax.f32 %v1886, 0.0
        %v1919 = vmax.f32 %v1887, 0.0
        %v1920 = vmax.f32 %v1888, 0.0
        %v1921 = vmax.f32 %v1889, 0.0
        %v1922 = vmax.f32 %v1890, 0.0
        %v1923 = vmax.f32 %v1891, 0.0
        %v1924 = vmax.f32 %v1892, 0.0
        %v1925 = vmax.f32 %v1893, 0.0
        %v1926 = vmax.f32 %v1894, 0.0
        %v1927 = vmax.f32 %v1895, 0.0
        %v1928 = vmax.f32 %v1896, 0.0
        %v1929 = vmax.f32 %v1897, 0.0
        %v1930 = vmax.f32 %v1898, 0.0
        %v1931 = vmax.f32 %v1899, 0.0
        %v1932 = vmax.f32 %v1900, 0.0
        %v1933 = vmax.f32 %v1901, 0.0
        %v1934 = vmax.f32 %v1902, 0.0
        %v1935 = vmax.f32 %v1903, 0.0
        %v1936 = vmax.f32 %v1904, 0.0
        %v1937 = vmax.f32 %v1905, 0.0
        %v1938 = vmax.f32 %v1906, 0.0
        %v1939 = vmax.f32 %v1907, 0.0
        %v1940 = vmax.f32 %v1908, 0.0
        %v1941 = vmax.f32 %v1909, 0.0
        %v1942 = vmax.f32 %v1910, 0.0
        %v1943 = vmax.f32 %v1911, 0.0
        %v1944 = vmax.f32 %v1912, 0.0
        %v1945 = vmax.f32 %v1913, 0.0
        %v1946 = vmax.f32 %v1914, 0.0
        %v1947 = vmax.f32 %v1915, 0.0
        %v1948 = vmax.f32 %v1916, 0.0
        %v1949 = vmax.f32 %v1917, 0.0
        %v1950 = vpack.c.bf16 %v1919, %v1918
        %v1951 = vpack.c.bf16 %v1921, %v1920
        %v1952 = vpack.c.bf16 %v1923, %v1922
        %v1953 = vpack.c.bf16 %v1925, %v1924
        %v1954 = vpack.c.bf16 %v1927, %v1926
        %v1955 = vpack.c.bf16 %v1929, %v1928
        %v1956 = vpack.c.bf16 %v1931, %v1930
        %v1957 = vpack.c.bf16 %v1933, %v1932
        %v1958 = vpack.c.bf16 %v1935, %v1934
        %v1959 = vpack.c.bf16 %v1937, %v1936
        %v1960 = vpack.c.bf16 %v1939, %v1938
        %v1961 = vpack.c.bf16 %v1941, %v1940
        %v1962 = vpack.c.bf16 %v1943, %v1942
        %v1963 = vpack.c.bf16 %v1945, %v1944
        %v1964 = vpack.c.bf16 %v1947, %v1946
        %v1965 = vpack.c.bf16 %v1949, %v1948
        %v1982 = vunpack.c.l.b16 %v1950
        %v1983 = vunpack.c.h.b16 %v1950
        %v1984 = vunpack.c.l.b16 %v1951
        %v1985 = vunpack.c.h.b16 %v1951
        %v1986 = vunpack.c.l.b16 %v1952
        %v1987 = vunpack.c.h.b16 %v1952
        %v1988 = vunpack.c.l.b16 %v1953
        %v1989 = vunpack.c.h.b16 %v1953
        %v1990 = vunpack.c.l.b16 %v1954
        %v1991 = vunpack.c.h.b16 %v1954
        %v1992 = vunpack.c.l.b16 %v1955
        %v1993 = vunpack.c.h.b16 %v1955
        %v1994 = vunpack.c.l.b16 %v1956
        %v1995 = vunpack.c.h.b16 %v1956
        %v1996 = vunpack.c.l.b16 %v1957
        %v1997 = vunpack.c.h.b16 %v1957
        %v1998 = vunpack.c.l.b16 %v1958
        %v1999 = vunpack.c.h.b16 %v1958
        %v2000 = vunpack.c.l.b16 %v1959
        %v2001 = vunpack.c.h.b16 %v1959
        %v2002 = vunpack.c.l.b16 %v1960
        %v2003 = vunpack.c.h.b16 %v1960
        %v2004 = vunpack.c.l.b16 %v1961
        %v2005 = vunpack.c.h.b16 %v1961
        %v2006 = vunpack.c.l.b16 %v1962
        %v2007 = vunpack.c.h.b16 %v1962
        %v2008 = vunpack.c.l.b16 %v1963
        %v2009 = vunpack.c.h.b16 %v1963
        %v2010 = vunpack.c.l.b16 %v1964
        %v2011 = vunpack.c.h.b16 %v1964
        %v2012 = vunpack.c.l.b16 %v1965
        %v2013 = vunpack.c.h.b16 %v1965
        %v2014 = vpack.c.b16 %v1982, %v1982
        %v2015 = vpack.c.b16 %v1983, %v1983
        %v2016 = vpack.c.b16 %v1984, %v1984
        %v2017 = vpack.c.b16 %v1985, %v1985
        %v2018 = vpack.c.b16 %v1986, %v1986
        %v2019 = vpack.c.b16 %v1987, %v1987
        %v2020 = vpack.c.b16 %v1988, %v1988
        %v2021 = vpack.c.b16 %v1989, %v1989
        %v2022 = vpack.c.b16 %v1990, %v1990
        %v2023 = vpack.c.b16 %v1991, %v1991
        %v2024 = vpack.c.b16 %v1992, %v1992
        %v2025 = vpack.c.b16 %v1993, %v1993
        %v2026 = vpack.c.b16 %v1994, %v1994
        %v2027 = vpack.c.b16 %v1995, %v1995
        %v2028 = vpack.c.b16 %v1996, %v1996
        %v2029 = vpack.c.b16 %v1997, %v1997
        %v2030 = vpack.c.b16 %v1998, %v1998
        %v2031 = vpack.c.b16 %v1999, %v1999
        %v2032 = vpack.c.b16 %v2000, %v2000
        %v2033 = vpack.c.b16 %v2001, %v2001
        %v2034 = vpack.c.b16 %v2002, %v2002
        %v2035 = vpack.c.b16 %v2003, %v2003
        %v2036 = vpack.c.b16 %v2004, %v2004
        %v2037 = vpack.c.b16 %v2005, %v2005
        %v2038 = vpack.c.b16 %v2006, %v2006
        %v2039 = vpack.c.b16 %v2007, %v2007
        %v2040 = vpack.c.b16 %v2008, %v2008
        %v2041 = vpack.c.b16 %v2009, %v2009
        %v2042 = vpack.c.b16 %v2010, %v2010
        %v2043 = vpack.c.b16 %v2011, %v2011
        %v2044 = vpack.c.b16 %v2012, %v2012
        %v2045 = vpack.c.b16 %v2013, %v2013
        %vm2078 = vcmask 519168
        %2079 = vst.msk [vmem:[%s163] sm:$0xf] %vm2078, %v2014
        %2080 = vst.msk [vmem:[%s163 + $0x4] sm:$0xf] %vm2078, %v2015
        %2081 = vst.msk [vmem:[%s163 + $0x8] sm:$0xf] %vm2078, %v2016
        %2082 = vst.msk [vmem:[%s163 + $0xc] sm:$0xf] %vm2078, %v2017
        %2083 = vst.msk [vmem:[%s163 + $0x10] sm:$0xf] %vm2078, %v2018
        %2084 = vst.msk [vmem:[%s163 + $0x14] sm:$0xf] %vm2078, %v2019
        %2085 = vst.msk [vmem:[%s163 + $0x18] sm:$0xf] %vm2078, %v2020
        %2086 = vst.msk [vmem:[%s163 + $0x1c] sm:$0xf] %vm2078, %v2021
        %2087 = vst.msk [vmem:[%s163 + $0x20] sm:$0xf] %vm2078, %v2022
        %2088 = vst.msk [vmem:[%s163 + $0x24] sm:$0xf] %vm2078, %v2023
        %2089 = vst.msk [vmem:[%s163 + $0x28] sm:$0xf] %vm2078, %v2024
        %2090 = vst.msk [vmem:[%s163 + $0x2c] sm:$0xf] %vm2078, %v2025
        %2091 = vst.msk [vmem:[%s163 + $0x30] sm:$0xf] %vm2078, %v2026
        %2092 = vst.msk [vmem:[%s163 + $0x34] sm:$0xf] %vm2078, %v2027
        %2093 = vst.msk [vmem:[%s163 + $0x38] sm:$0xf] %vm2078, %v2028
        %2094 = vst.msk [vmem:[%s163 + $0x3c] sm:$0xf] %vm2078, %v2029
        %2095 = vst.msk [vmem:[%s163 + $0x40] sm:$0xf] %vm2078, %v2030
        %2096 = vst.msk [vmem:[%s163 + $0x44] sm:$0xf] %vm2078, %v2031
        %2097 = vst.msk [vmem:[%s163 + $0x48] sm:$0xf] %vm2078, %v2032
        %2098 = vst.msk [vmem:[%s163 + $0x4c] sm:$0xf] %vm2078, %v2033
        %2099 = vst.msk [vmem:[%s163 + $0x50] sm:$0xf] %vm2078, %v2034
        %2100 = vst.msk [vmem:[%s163 + $0x54] sm:$0xf] %vm2078, %v2035
        %2101 = vst.msk [vmem:[%s163 + $0x58] sm:$0xf] %vm2078, %v2036
        %2102 = vst.msk [vmem:[%s163 + $0x5c] sm:$0xf] %vm2078, %v2037
        %2103 = vst.msk [vmem:[%s163 + $0x60] sm:$0xf] %vm2078, %v2038
        %2104 = vst.msk [vmem:[%s163 + $0x64] sm:$0xf] %vm2078, %v2039
        %2105 = vst.msk [vmem:[%s163 + $0x68] sm:$0xf] %vm2078, %v2040
        %2106 = vst.msk [vmem:[%s163 + $0x6c] sm:$0xf] %vm2078, %v2041
        %2107 = vst.msk [vmem:[%s163 + $0x70] sm:$0xf] %vm2078, %v2042
        %2108 = vst.msk [vmem:[%s163 + $0x74] sm:$0xf] %vm2078, %v2043
        %2109 = vst.msk [vmem:[%s163 + $0x78] sm:$0xf] %vm2078, %v2044
        %2110 = vst.msk [vmem:[%s163 + $0x7c] sm:$0xf] %vm2078, %v2045
        %s2111 = sand.u32 %s93, 1
        %s2112 = scalar_lea.sflag [#allocation5], %s2111
        %s2113 = sand.u32 %s93, 1
        %s2114 = smul.addr %s2113, 128
        %s2115 = scalar_lea.vmem [#allocation4], %s2114
        // Predicated region
        $region33: #{tpu_custom_call.1} parent=31 // pred_check
          %p2116 = pneg %p103
        $region34: #{tpu_custom_call.1} parent=31 // pred_check_branch
          %2118 = sbr.rel (%p2116) target = $region36
        $region35: #{tpu_custom_call.1} parent=31 // pred_region
          %s2120 = ssub.s32 2048, 2048
          %2121 = vsyncadd %s2112, %s2120
          %s2122 = smul.addr %s17, 32
          %s2123 = smul.addr %s2122, 64
          %s2124 = scalar_lea.hbm %s3, %s2123
          %s2125 = sshll.u32 %s2115, 4
          %s2126 = int_to_ptr.vmem [resolvable:$true] %s2125
          %2131 = dma.vmem_to_hbm [thread:$0]  %s2126, 2048, %s2124, %s2112, 64, 64, 4
        $region36: #{tpu_custom_call.1} parent=31 // pred_fallthru
          _
      $region32: #{tpu_custom_call.1} parent=5 // pred_fallthru
        _
      %p2132 = scmp.le.s32.totalorder 2, %s12
      // Predicated region
      $region37: #{tpu_custom_call.1} parent=5 // pred_check
        %p2133 = pneg %p2132
      $region38: #{tpu_custom_call.1} parent=5 // pred_check_branch
        %2135 = sbr.rel (%p2133) target = $region40
      $region39: #{tpu_custom_call.1} parent=5 // pred_region
        %s2136 = ssub.s32 %s12, 2
        // Predicated region
        $region41: #{tpu_custom_call.1} parent=39 // pred_check
          %p2137 = pneg %p109
        $region42: #{tpu_custom_call.1} parent=39 // pred_check_branch
          %2139 = sbr.rel (%p2137) target = $region44
        $region43: #{tpu_custom_call.1} parent=39 // pred_region
          %s2140 = sand.u32 %s94, 1
          %s2141 = scalar_lea.sflag [#allocation5], %s2140
          %s2142 = sand.u32 %s94, 1
          %s2143 = smul.addr %s2142, 128
          %s2144 = scalar_lea.vmem [#allocation4], %s2143
          %2145 = dma.done %s2141, 2048
        $region44: #{tpu_custom_call.1} parent=39 // pred_fallthru
          _
      $region40: #{tpu_custom_call.1} parent=5 // pred_fallthru
        _
    $region6: #{tpu_custom_call.1} parent=1 // loop_footer
      %s16 = sadd.s32 1, %s12
    $region7: #{tpu_custom_call.1} parent=1 // loop_footer_branch
      %11 = sbr.rel target = $region3
    $region8: #{tpu_custom_call.1} parent=1 // loop_exit
      _
    %2146 = vsyncpa [#allocation5], 1
    %s2147 = scalar_lea.sflag [#allocation5], 1
    %2148 = vsyncpa %s2147, 1

</llo_original>
